<compile_context>
chip_gen: v6e
topology: v6e:2x2x1
jax: 0.10.0
libtpu: 0.0.40
codegen_flags: <defaults>
</compile_context>

<pallas_src>
import jax
import jax.numpy as jnp
from jax.experimental import pallas as pl
from jax.experimental.pallas import tpu as pltpu

SCALE_X = 10.0
SCALE_F = 30.0
DIM_HIDDEN = 32      # dim_hidden (small-but-TPU-friendly)
BLOCK_N = 1024       # rows (now on the lane axis) per grid step

# Constant (6,4) selection/difference matrix T such that  s = x_unit @ T
#   s[:,0:2] = x_unit[:,0:2] - x_unit[:,2:4]
#   s[:,2:4] = x_unit[:,4:6] - x_unit[:,2:4]
_T_DIFF = jnp.array(
    [[ 1.0,  0.0,  0.0,  0.0],
     [ 0.0,  1.0,  0.0,  0.0],
     [-1.0,  0.0, -1.0,  0.0],
     [ 0.0, -1.0,  0.0, -1.0],
     [ 0.0,  0.0,  1.0,  0.0],
     [ 0.0,  0.0,  0.0,  1.0]], dtype=jnp.float32)


def _nn_approx_kernel(xT_ref, w1_ref, b1_ref, w2_ref, b2_ref, w3_ref, b3_ref, oT_ref):
    # xT_ref: (6, BLOCK_N)  -- rows on lanes (lane-dense)
    # w1: (H, 6)  b1: (H, 1)   (diff/scale_x already folded in)
    # w2: (H, H)  b2: (H, 1)
    # w3: (2, H)  b3: (2, 1)   (scale_f already folded in)
    h = jnp.tanh(
        jnp.dot(w1_ref[...], xT_ref[...], preferred_element_type=jnp.float32)
        + b1_ref[...]
    )                                                    # (H, BLOCK_N)
    h = jnp.tanh(
        jnp.dot(w2_ref[...], h, preferred_element_type=jnp.float32)
        + b2_ref[...]
    )                                                    # (H, BLOCK_N)
    oT_ref[...] = (
        jnp.dot(w3_ref[...], h, preferred_element_type=jnp.float32)
        + b3_ref[...]
    )                                                    # (2, BLOCK_N), lane-dense store


def nn_approximator_forward(x, params, *, block_n=BLOCK_N):
    """x: any shape reshapable to (-1, 6). Returns (N, 2) float32."""
    w_in, b_in, w_mid, b_mid, w_out, b_out = params
    hdim = w_in.shape[1]

    x2 = jnp.asarray(x, jnp.float32).reshape(-1, 6)
    n = x2.shape[0]
    n_pad = pl.cdiv(n, block_n) * block_n
    if n_pad != n:
        x2 = jnp.pad(x2, ((0, n_pad - n), (0, 0)))
    xT = x2.T                                            # (6, n_pad)

    # Fold diff/selection + 1/scale_x into the first weight; scale_f into the last.
    w1 = ((_T_DIFF @ w_in) / SCALE_X).T                  # (H, 6)
    b1 = b_in.reshape(-1, 1)                             # (H, 1)
    w2 = w_mid.T                                         # (H, H)
    b2 = b_mid.reshape(-1, 1)                            # (H, 1)
    w3 = (w_out * SCALE_F).T                             # (2, H)
    b3 = (b_out * SCALE_F).reshape(-1, 1)                # (2, 1)

    grid = (n_pad // block_n,)
    const = lambda i: (0, 0)                             # grid-invariant operands

    outT = pl.pallas_call(
        _nn_approx_kernel,
        out_shape=jax.ShapeDtypeStruct((2, n_pad), jnp.float32),
        grid_spec=pltpu.PrefetchScalarGridSpec(
            num_scalar_prefetch=0,
            grid=grid,
            in_specs=[
                pl.BlockSpec((6, block_n), lambda i: (0, i)),   # x^T tile
                pl.BlockSpec((hdim, 6), const),                 # W1
                pl.BlockSpec((hdim, 1), const),                 # b1
                pl.BlockSpec((hdim, hdim), const),              # W2
                pl.BlockSpec((hdim, 1), const),                 # b2
                pl.BlockSpec((2, hdim), const),                 # W3
                pl.BlockSpec((2, 1), const),                    # b3
            ],
            out_specs=pl.BlockSpec((2, block_n), lambda i: (0, i)),
        ),
        compiler_params=pltpu.CompilerParams(
            dimension_semantics=("parallel",),
        ),
    )(xT, w1, b1, w2, b2, w3, b3)

    return outT.T[:n]                                    # (N, 2)


def init_params(key, dim_hidden=DIM_HIDDEN):
    """Deterministic synthetic parameters (shapes match the nn.Linear layers)."""
    ks = jax.random.split(key, 6)
    w_in = jax.random.normal(ks[0], (4, dim_hidden), jnp.float32) * 0.5
    b_in = jax.random.normal(ks[1], (1, dim_hidden), jnp.float32) * 0.1
    w_mid = jax.random.normal(ks[2], (dim_hidden, dim_hidden), jnp.float32) * 0.2
    b_mid = jax.random.normal(ks[3], (dim_hidden, dim_hidden * 0 + 1), jnp.float32).T * 0.1
    b_mid = b_mid.reshape(1, dim_hidden)
    w_out = jax.random.normal(ks[4], (dim_hidden, 2), jnp.float32) * 0.5
    b_out = jax.random.normal(ks[5], (1, 2), jnp.float32) * 0.1
    return (w_in, b_in, w_mid, b_mid, w_out, b_out)


def _reference_forward(x, params):
    """Pure-JAX reference (mirrors PyTorch forward) for a correctness check."""
    w_in, b_in, w_mid, b_mid, w_out, b_out = params
    x_unit = x.reshape(-1, 6) / SCALE_X
    s = jnp.concatenate(
        [x_unit[:, 0:2] - x_unit[:, 2:4], x_unit[:, 4:6] - x_unit[:, 2:4]], axis=-1
    )
    h = jnp.tanh(s @ w_in + b_in)
    h = jnp.tanh(h @ w_mid + b_mid)
    return (h @ w_out + b_out) * SCALE_F


if __name__ == "__main__":
    key = jax.random.PRNGKey(0)
    kx, kp = jax.random.split(key)

    # 2500 particle-triplet samples, each a flat 6-vector (x1, x2, x3 positions in 2D).
    # Non-multiple of BLOCK_N on purpose: exercises padding + a multi-step grid.
    n_samples = 2500
    x = jax.random.normal(kx, (n_samples, 6), jnp.float32) * 5.0
    params = init_params(kp)

    out = nn_approximator_forward(x, params)
    out = jax.block_until_ready(out)

    ref = _reference_forward(x, params)
    assert out.shape == (n_samples, 2), out.shape
    assert jnp.allclose(out, ref, atol=1e-3, rtol=1e-4), float(jnp.max(jnp.abs(out - ref)))

    print("KERNEL_OK")
</pallas_src>

<mosaic_0001>
module attributes {stable_mosaic.version = 11 : i64} {
  func.func @_nn_approx_kernel(%arg0: i32, %arg1: memref<6x1024xf32, #tpu.memory_space<vmem>>, %arg2: memref<32x6xf32, #tpu.memory_space<vmem>>, %arg3: memref<32x1xf32, #tpu.memory_space<vmem>>, %arg4: memref<32x32xf32, #tpu.memory_space<vmem>>, %arg5: memref<32x1xf32, #tpu.memory_space<vmem>>, %arg6: memref<2x32xf32, #tpu.memory_space<vmem>>, %arg7: memref<2x1xf32, #tpu.memory_space<vmem>>, %arg8: memref<2x1024xf32, #tpu.memory_space<vmem>>) attributes {dimension_semantics = [#tpu.dimension_semantics<parallel>], iteration_bounds = array<i64: 3>, scalar_prefetch = 0 : i64, scratch_operands = 0 : i64, tpu.core_type = #tpu.core_type<tc>, window_params = [{transform_indices = @transform_0, window_bounds = array<i64: 6, 1024>}, {pipeline_mode = #tpu.pipeline_mode<synchronous>, transform_indices = @transform_1, window_bounds = array<i64: 32, 6>}, {pipeline_mode = #tpu.pipeline_mode<synchronous>, transform_indices = @transform_2, window_bounds = array<i64: 32, 1>}, {pipeline_mode = #tpu.pipeline_mode<synchronous>, transform_indices = @transform_3, window_bounds = array<i64: 32, 32>}, {pipeline_mode = #tpu.pipeline_mode<synchronous>, transform_indices = @transform_4, window_bounds = array<i64: 32, 1>}, {pipeline_mode = #tpu.pipeline_mode<synchronous>, transform_indices = @transform_5, window_bounds = array<i64: 2, 32>}, {pipeline_mode = #tpu.pipeline_mode<synchronous>, transform_indices = @transform_6, window_bounds = array<i64: 2, 1>}, {transform_indices = @transform_7, window_bounds = array<i64: 2, 1024>}]} {
    %c0 = arith.constant 0 : index
    %c0_0 = arith.constant 0 : index
    %0 = vector.load %arg2[%c0, %c0_0] : memref<32x6xf32, #tpu.memory_space<vmem>>, vector<32x6xf32>
    %c0_1 = arith.constant 0 : index
    %c0_2 = arith.constant 0 : index
    %1 = vector.load %arg1[%c0_1, %c0_2] : memref<6x1024xf32, #tpu.memory_space<vmem>>, vector<6x1024xf32>
    %cst = arith.constant dense<0.000000e+00> : vector<32x1024xf32>
    %2 = tpu.matmul %0, %1, %cst {dimension_numbers = #tpu.dot_dimension_numbers<[1], [0], [0], [1], [0, 0, 1, 1], [], []>} : vector<32x6xf32>, vector<6x1024xf32>, vector<32x1024xf32> -> vector<32x1024xf32>
    %c0_3 = arith.constant 0 : index
    %c0_4 = arith.constant 0 : index
    %3 = vector.load %arg3[%c0_3, %c0_4] : memref<32x1xf32, #tpu.memory_space<vmem>>, vector<32x1xf32>
    %4 = vector.broadcast %3 : vector<32x1xf32> to vector<32x1024xf32>
    %5 = arith.addf %2, %4 : vector<32x1024xf32>
    %6 = math.tanh %5 : vector<32x1024xf32>
    %c0_5 = arith.constant 0 : index
    %c0_6 = arith.constant 0 : index
    %7 = vector.load %arg4[%c0_5, %c0_6] : memref<32x32xf32, #tpu.memory_space<vmem>>, vector<32x32xf32>
    %cst_7 = arith.constant dense<0.000000e+00> : vector<32x1024xf32>
    %8 = tpu.matmul %7, %6, %cst_7 {dimension_numbers = #tpu.dot_dimension_numbers<[1], [0], [0], [1], [0, 0, 1, 1], [], []>} : vector<32x32xf32>, vector<32x1024xf32>, vector<32x1024xf32> -> vector<32x1024xf32>
    %c0_8 = arith.constant 0 : index
    %c0_9 = arith.constant 0 : index
    %9 = vector.load %arg5[%c0_8, %c0_9] : memref<32x1xf32, #tpu.memory_space<vmem>>, vector<32x1xf32>
    %10 = vector.broadcast %9 : vector<32x1xf32> to vector<32x1024xf32>
    %11 = arith.addf %8, %10 : vector<32x1024xf32>
    %12 = math.tanh %11 : vector<32x1024xf32>
    %c0_10 = arith.constant 0 : index
    %c0_11 = arith.constant 0 : index
    %13 = vector.load %arg6[%c0_10, %c0_11] : memref<2x32xf32, #tpu.memory_space<vmem>>, vector<2x32xf32>
    %cst_12 = arith.constant dense<0.000000e+00> : vector<2x1024xf32>
    %14 = tpu.matmul %13, %12, %cst_12 {dimension_numbers = #tpu.dot_dimension_numbers<[1], [0], [0], [1], [0, 0, 1, 1], [], []>} : vector<2x32xf32>, vector<32x1024xf32>, vector<2x1024xf32> -> vector<2x1024xf32>
    %c0_13 = arith.constant 0 : index
    %c0_14 = arith.constant 0 : index
    %15 = vector.load %arg7[%c0_13, %c0_14] : memref<2x1xf32, #tpu.memory_space<vmem>>, vector<2x1xf32>
    %16 = vector.broadcast %15 : vector<2x1xf32> to vector<2x1024xf32>
    %17 = arith.addf %14, %16 : vector<2x1024xf32>
    %c0_15 = arith.constant 0 : index
    %c0_16 = arith.constant 0 : index
    %18 = vector.load %arg8[%c0_15, %c0_16] : memref<2x1024xf32, #tpu.memory_space<vmem>>, vector<2x1024xf32>
    tpu.vector_store %arg8[%c0_15, %c0_16], %17 {strides = array<i32>} : memref<2x1024xf32, #tpu.memory_space<vmem>>, vector<2x1024xf32>,
    return
  }
  func.func @transform_0(%arg0: i32) -> (i32, i32) {
    %c0_i32 = arith.constant 0 : i32
    %c0_i32_0 = arith.constant 0 : i32
    return %c0_i32, %arg0 : i32, i32
  }
  func.func @transform_1(%arg0: i32) -> (i32, i32) {
    %c0_i32 = arith.constant 0 : i32
    %c0_i32_0 = arith.constant 0 : i32
    %c0_i32_1 = arith.constant 0 : i32
    return %c0_i32, %c0_i32_0 : i32, i32
  }
  func.func @transform_2(%arg0: i32) -> (i32, i32) {
    %c0_i32 = arith.constant 0 : i32
    %c0_i32_0 = arith.constant 0 : i32
    %c0_i32_1 = arith.constant 0 : i32
    return %c0_i32, %c0_i32_0 : i32, i32
  }
  func.func @transform_3(%arg0: i32) -> (i32, i32) {
    %c0_i32 = arith.constant 0 : i32
    %c0_i32_0 = arith.constant 0 : i32
    %c0_i32_1 = arith.constant 0 : i32
    return %c0_i32, %c0_i32_0 : i32, i32
  }
  func.func @transform_4(%arg0: i32) -> (i32, i32) {
    %c0_i32 = arith.constant 0 : i32
    %c0_i32_0 = arith.constant 0 : i32
    %c0_i32_1 = arith.constant 0 : i32
    return %c0_i32, %c0_i32_0 : i32, i32
  }
  func.func @transform_5(%arg0: i32) -> (i32, i32) {
    %c0_i32 = arith.constant 0 : i32
    %c0_i32_0 = arith.constant 0 : i32
    %c0_i32_1 = arith.constant 0 : i32
    return %c0_i32, %c0_i32_0 : i32, i32
  }
  func.func @transform_6(%arg0: i32) -> (i32, i32) {
    %c0_i32 = arith.constant 0 : i32
    %c0_i32_0 = arith.constant 0 : i32
    %c0_i32_1 = arith.constant 0 : i32
    return %c0_i32, %c0_i32_0 : i32, i32
  }
  func.func @transform_7(%arg0: i32) -> (i32, i32) {
    %c0_i32 = arith.constant 0 : i32
    %c0_i32_0 = arith.constant 0 : i32
    return %c0_i32, %arg0 : i32, i32
  }
}

</mosaic_0001>

<llo_original>
// kernel: tpu_custom_call.1
$region0: #{tpu_custom_call.1}
  #allocation0 [shape = 'u32[]', space=smem, size = 0x4, offset = 0x4, fixed_abs, tag = 'smem constant byte address 0x4 - core index']
  #allocation1 [shape = 'u32[144,128]{1,0:T(1,128)}', space=vmem, size = 0x12000, scoped, tag = 'internal scratch']
  %s0 = inlined_call_operand.hbm [shape: f32[6,3072], index: 0, kind: input, shape index: {}]
  %s1 = inlined_call_operand.vmem [shape: f32[32,6], index: 1, kind: input, shape index: {}]
  %s2 = inlined_call_operand.vmem [shape: f32[32,1], index: 2, kind: input, shape index: {}]
  %s3 = inlined_call_operand.vmem [shape: f32[32,32], index: 3, kind: input, shape index: {}]
  %s4 = inlined_call_operand.vmem [shape: f32[32,1], index: 4, kind: input, shape index: {}]
  %s5 = inlined_call_operand.vmem [shape: f32[2,32], index: 5, kind: input, shape index: {}]
  %s6 = inlined_call_operand.vmem [shape: f32[2,1], index: 6, kind: input, shape index: {}]
  %s7 = inlined_call_operand.hbm [shape: f32[2,3072], index: 7, kind: output, shape index: {}]
  %s8 = sld [smem:[#allocation0]]
  $region65: #{tpu_custom_call.1} parent=0
    _
  %s10 = ssub.s32 1, %s8
  %s11 = scalar_select 0, %s10, %s8
  $region1: #{tpu_custom_call.1} parent=0
    #allocation2 [shape = 'u8[65536]{0}', space=vmem, size = 0x10000, scoped, tag = 'input window, operand 0']
    #allocation3 [shape = 's32[2]{0}', space=sflag, size = 0x8, scoped, tag = 'scoped memory for tpu_custom_call.1']
    #allocation4 [shape = 's32[2]{0}', space=sflag, size = 0x8, scoped, tag = 'scoped memory for tpu_custom_call.1']
    #allocation5 [shape = 'u8[16384]{0}', space=vmem, size = 0x4000, scoped, tag = 'output window, operand 0']
    %12 = vsyncpa [#allocation3], 0
    %s13 = scalar_lea.sflag [#allocation3], 1
    %14 = vsyncpa %s13, 0
    %15 = vsyncpa [#allocation4], 0
    %s16 = scalar_lea.sflag [#allocation4], 1
    %17 = vsyncpa %s16, 0
    loop: start=0, step=1, limit=5
    $region2: #{tpu_custom_call.1} parent=1 // loop_pre_header
      _
    $region3: #{tpu_custom_call.1} parent=1 // loop_header
      %s19 = sphi 0, %s23
      %p20 = scmp.ge.s32.totalorder %s19, 5
      %s29 = sphi 0, %s31
      %s32 = sphi 0, %s29
      %s33 = sphi 0, %s32
      %s49 = sphi 0, %s33
      %s53 = sphi 0, %s53
      %s55 = sphi 0, %s53
      %s56 = sphi 0, %s55
      %s70 = sphi 0, %s56
      %s74 = sphi 0, %s74
      %s76 = sphi 0, %s74
      %s77 = sphi 0, %s76
      %s91 = sphi 0, %s77
      %s95 = sphi 0, %s95
      %s97 = sphi 0, %s95
      %s98 = sphi 0, %s97
      %s112 = sphi 0, %s98
      %s116 = sphi 0, %s116
      %s118 = sphi 0, %s116
      %s119 = sphi 0, %s118
      %s133 = sphi 0, %s119
      %s137 = sphi 0, %s137
      %s139 = sphi 0, %s137
      %s140 = sphi 0, %s139
      %s154 = sphi 0, %s140
      %s158 = sphi 0, %s158
      %s160 = sphi 0, %s158
      %s161 = sphi 0, %s160
      %s175 = sphi 0, %s161
      %s181 = sphi 0, %s183
      %s184 = sphi 0, %s181
      %s185 = sphi 0, %s184
      %s201 = sphi 0, %s185
    $region4: #{tpu_custom_call.1} parent=1 // loop_header_branch
      %22 = sbr.rel (%p20) target = $region8
    $region5: #{tpu_custom_call.1} parent=1 // loop_body
      %s24 = ssub.s32 %s19, 1
      %s25 = ssub.s32 %s19, 2
      %s26 = sadd.s32 %s19, 1
      %s27 = ssub.s32 %s19, %s26
      %p28 = scmp.eq.s32.totalorder %s27, 0
      %s30 = sadd.s32 %s29, 1
      %s31 = scalar_select %p28, %s29, %s30
      %p34 = pneg %p28
      %p35 = scmp.eq.s32.totalorder %s19, 2
      %p36 = por %p34, %p35
      %p37 = scmp.ne.s32.totalorder %s29, %s32
      %p38 = scmp.eq.s32.totalorder %s19, 0
      %p39 = por %p37, %p38
      %p40 = scmp.ne.s32.totalorder %s29, %s32
      %p41 = scmp.eq.s32.totalorder %s24, 2
      %p42 = por %p40, %p41
      %p43 = scmp.ne.s32.totalorder %s32, %s33
      %p44 = scmp.eq.s32.totalorder %s24, 0
      %p45 = por %p43, %p44
      %p46 = scmp.ne.s32.totalorder %s32, %s33
      %p47 = scmp.eq.s32.totalorder %s25, 2
      %p48 = por %p46, %p47
      %p50 = scmp.ne.s32.totalorder %s33, %s49
      %p51 = scmp.eq.s32.totalorder %s25, 0
      %p52 = por %p50, %p51
      %s54 = sadd.s32 %s53, 1
      %p57 = scmp.eq.s32.totalorder %s19, 2
      %p58 = scmp.ne.s32.totalorder %s53, %s55
      %p59 = scmp.eq.s32.totalorder %s19, 0
      %p60 = por %p58, %p59
      %p61 = scmp.ne.s32.totalorder %s53, %s55
      %p62 = scmp.eq.s32.totalorder %s24, 2
      %p63 = por %p61, %p62
      %p64 = scmp.ne.s32.totalorder %s55, %s56
      %p65 = scmp.eq.s32.totalorder %s24, 0
      %p66 = por %p64, %p65
      %p67 = scmp.ne.s32.totalorder %s55, %s56
      %p68 = scmp.eq.s32.totalorder %s25, 2
      %p69 = por %p67, %p68
      %p71 = scmp.ne.s32.totalorder %s56, %s70
      %p72 = scmp.eq.s32.totalorder %s25, 0
      %p73 = por %p71, %p72
      %s75 = sadd.s32 %s74, 1
      %p78 = scmp.eq.s32.totalorder %s19, 2
      %p79 = scmp.ne.s32.totalorder %s74, %s76
      %p80 = scmp.eq.s32.totalorder %s19, 0
      %p81 = por %p79, %p80
      %p82 = scmp.ne.s32.totalorder %s74, %s76
      %p83 = scmp.eq.s32.totalorder %s24, 2
      %p84 = por %p82, %p83
      %p85 = scmp.ne.s32.totalorder %s76, %s77
      %p86 = scmp.eq.s32.totalorder %s24, 0
      %p87 = por %p85, %p86
      %p88 = scmp.ne.s32.totalorder %s76, %s77
      %p89 = scmp.eq.s32.totalorder %s25, 2
      %p90 = por %p88, %p89
      %p92 = scmp.ne.s32.totalorder %s77, %s91
      %p93 = scmp.eq.s32.totalorder %s25, 0
      %p94 = por %p92, %p93
      %s96 = sadd.s32 %s95, 1
      %p99 = scmp.eq.s32.totalorder %s19, 2
      %p100 = scmp.ne.s32.totalorder %s95, %s97
      %p101 = scmp.eq.s32.totalorder %s19, 0
      %p102 = por %p100, %p101
      %p103 = scmp.ne.s32.totalorder %s95, %s97
      %p104 = scmp.eq.s32.totalorder %s24, 2
      %p105 = por %p103, %p104
      %p106 = scmp.ne.s32.totalorder %s97, %s98
      %p107 = scmp.eq.s32.totalorder %s24, 0
      %p108 = por %p106, %p107
      %p109 = scmp.ne.s32.totalorder %s97, %s98
      %p110 = scmp.eq.s32.totalorder %s25, 2
      %p111 = por %p109, %p110
      %p113 = scmp.ne.s32.totalorder %s98, %s112
      %p114 = scmp.eq.s32.totalorder %s25, 0
      %p115 = por %p113, %p114
      %s117 = sadd.s32 %s116, 1
      %p120 = scmp.eq.s32.totalorder %s19, 2
      %p121 = scmp.ne.s32.totalorder %s116, %s118
      %p122 = scmp.eq.s32.totalorder %s19, 0
      %p123 = por %p121, %p122
      %p124 = scmp.ne.s32.totalorder %s116, %s118
      %p125 = scmp.eq.s32.totalorder %s24, 2
      %p126 = por %p124, %p125
      %p127 = scmp.ne.s32.totalorder %s118, %s119
      %p128 = scmp.eq.s32.totalorder %s24, 0
      %p129 = por %p127, %p128
      %p130 = scmp.ne.s32.totalorder %s118, %s119
      %p131 = scmp.eq.s32.totalorder %s25, 2
      %p132 = por %p130, %p131
      %p134 = scmp.ne.s32.totalorder %s119, %s133
      %p135 = scmp.eq.s32.totalorder %s25, 0
      %p136 = por %p134, %p135
      %s138 = sadd.s32 %s137, 1
      %p141 = scmp.eq.s32.totalorder %s19, 2
      %p142 = scmp.ne.s32.totalorder %s137, %s139
      %p143 = scmp.eq.s32.totalorder %s19, 0
      %p144 = por %p142, %p143
      %p145 = scmp.ne.s32.totalorder %s137, %s139
      %p146 = scmp.eq.s32.totalorder %s24, 2
      %p147 = por %p145, %p146
      %p148 = scmp.ne.s32.totalorder %s139, %s140
      %p149 = scmp.eq.s32.totalorder %s24, 0
      %p150 = por %p148, %p149
      %p151 = scmp.ne.s32.totalorder %s139, %s140
      %p152 = scmp.eq.s32.totalorder %s25, 2
      %p153 = por %p151, %p152
      %p155 = scmp.ne.s32.totalorder %s140, %s154
      %p156 = scmp.eq.s32.totalorder %s25, 0
      %p157 = por %p155, %p156
      %s159 = sadd.s32 %s158, 1
      %p162 = scmp.eq.s32.totalorder %s19, 2
      %p163 = scmp.ne.s32.totalorder %s158, %s160
      %p164 = scmp.eq.s32.totalorder %s19, 0
      %p165 = por %p163, %p164
      %p166 = scmp.ne.s32.totalorder %s158, %s160
      %p167 = scmp.eq.s32.totalorder %s24, 2
      %p168 = por %p166, %p167
      %p169 = scmp.ne.s32.totalorder %s160, %s161
      %p170 = scmp.eq.s32.totalorder %s24, 0
      %p171 = por %p169, %p170
      %p172 = scmp.ne.s32.totalorder %s160, %s161
      %p173 = scmp.eq.s32.totalorder %s25, 2
      %p174 = por %p172, %p173
      %p176 = scmp.ne.s32.totalorder %s161, %s175
      %p177 = scmp.eq.s32.totalorder %s25, 0
      %p178 = por %p176, %p177
      %s179 = ssub.s32 %s19, %s26
      %p180 = scmp.eq.s32.totalorder %s179, 0
      %s182 = sadd.s32 %s181, 1
      %s183 = scalar_select %p180, %s181, %s182
      %p186 = pneg %p180
      %p187 = scmp.eq.s32.totalorder %s19, 2
      %p188 = por %p186, %p187
      %p189 = scmp.ne.s32.totalorder %s181, %s184
      %p190 = scmp.eq.s32.totalorder %s19, 0
      %p191 = por %p189, %p190
      %p192 = scmp.ne.s32.totalorder %s181, %s184
      %p193 = scmp.eq.s32.totalorder %s24, 2
      %p194 = por %p192, %p193
      %p195 = scmp.ne.s32.totalorder %s184, %s185
      %p196 = scmp.eq.s32.totalorder %s24, 0
      %p197 = por %p195, %p196
      %p198 = scmp.ne.s32.totalorder %s184, %s185
      %p199 = scmp.eq.s32.totalorder %s25, 2
      %p200 = por %p198, %p199
      %p202 = scmp.ne.s32.totalorder %s185, %s201
      %p203 = scmp.eq.s32.totalorder %s25, 0
      %p204 = por %p202, %p203
      %p205 = scmp.le.s32.totalorder 1, %s19
      %p206 = scmp.lt.s32.totalorder %s19, 4
      %p207 = pnand %p205, %p206
      %p208 = pneg %p207
      // Predicated region
      $region9: #{tpu_custom_call.1} parent=5 // pred_check
        _
      $region10: #{tpu_custom_call.1} parent=5 // pred_check_branch
        %210 = sbr.rel (%p207) target = $region12
      $region11: #{tpu_custom_call.1} parent=5 // pred_region
        %s211 = ssub.s32 %s19, 1
        // Predicated region
        $region13: #{tpu_custom_call.1} parent=11 // pred_check
          %p212 = pneg %p66
        $region14: #{tpu_custom_call.1} parent=11 // pred_check_branch
          %214 = sbr.rel (%p212) target = $region16
        $region15: #{tpu_custom_call.1} parent=11 // pred_region
          _
        $region16: #{tpu_custom_call.1} parent=11 // pred_fallthru
          _
        // Predicated region
        $region17: #{tpu_custom_call.1} parent=11 // pred_check
          %p215 = pneg %p87
        $region18: #{tpu_custom_call.1} parent=11 // pred_check_branch
          %217 = sbr.rel (%p215) target = $region20
        $region19: #{tpu_custom_call.1} parent=11 // pred_region
          _
        $region20: #{tpu_custom_call.1} parent=11 // pred_fallthru
          _
        // Predicated region
        $region21: #{tpu_custom_call.1} parent=11 // pred_check
          %p218 = pneg %p108
        $region22: #{tpu_custom_call.1} parent=11 // pred_check_branch
          %220 = sbr.rel (%p218) target = $region24
        $region23: #{tpu_custom_call.1} parent=11 // pred_region
          _
        $region24: #{tpu_custom_call.1} parent=11 // pred_fallthru
          _
        // Predicated region
        $region25: #{tpu_custom_call.1} parent=11 // pred_check
          %p221 = pneg %p129
        $region26: #{tpu_custom_call.1} parent=11 // pred_check_branch
          %223 = sbr.rel (%p221) target = $region28
        $region27: #{tpu_custom_call.1} parent=11 // pred_region
          _
        $region28: #{tpu_custom_call.1} parent=11 // pred_fallthru
          _
        // Predicated region
        $region29: #{tpu_custom_call.1} parent=11 // pred_check
          %p224 = pneg %p150
        $region30: #{tpu_custom_call.1} parent=11 // pred_check_branch
          %226 = sbr.rel (%p224) target = $region32
        $region31: #{tpu_custom_call.1} parent=11 // pred_region
          _
        $region32: #{tpu_custom_call.1} parent=11 // pred_fallthru
          _
        // Predicated region
        $region33: #{tpu_custom_call.1} parent=11 // pred_check
          %p227 = pneg %p171
        $region34: #{tpu_custom_call.1} parent=11 // pred_check_branch
          %229 = sbr.rel (%p227) target = $region36
        $region35: #{tpu_custom_call.1} parent=11 // pred_region
          _
        $region36: #{tpu_custom_call.1} parent=11 // pred_fallthru
          _
      $region12: #{tpu_custom_call.1} parent=5 // pred_fallthru
        _
      %p230 = scmp.lt.s32.totalorder %s19, 3
      // Predicated region
      $region37: #{tpu_custom_call.1} parent=5 // pred_check
        %p231 = pneg %p230
      $region38: #{tpu_custom_call.1} parent=5 // pred_check_branch
        %233 = sbr.rel (%p231) target = $region40
      $region39: #{tpu_custom_call.1} parent=5 // pred_region
        // Predicated region
        $region41: #{tpu_custom_call.1} parent=39 // pred_check
          %p234 = pneg %p39
        $region42: #{tpu_custom_call.1} parent=39 // pred_check_branch
          %236 = sbr.rel (%p234) target = $region44
        $region43: #{tpu_custom_call.1} parent=39 // pred_region
          %s237 = sand.u32 %s29, 1
          %s238 = scalar_lea.sflag [#allocation3], %s237
          %s239 = sand.u32 %s29, 1
          %s240 = smul.addr %s239, 64
          %s241 = scalar_lea.vmem [#allocation2], %s240
          %s242 = smul.u32 8, %s19
          %s244 = ssub.s32 1024, 1024
          %245 = vsyncadd %s238, %s244
          %s246 = smul.addr %s242, 128
          %s247 = scalar_lea.hbm %s0, %s246
          %s249 = sshll.u32 %s241, 4
          %s250 = int_to_ptr.vmem [resolvable:$true] %s249
          %252 = dma.hbm_to_vmem [thread:$0]  %s247, 1024, %s250, %s238
        $region44: #{tpu_custom_call.1} parent=39 // pred_fallthru
          _
      $region40: #{tpu_custom_call.1} parent=5 // pred_fallthru
        _
      %p253 = scmp.le.s32.totalorder 1, %s19
      %p254 = scmp.lt.s32.totalorder %s19, 4
      %p255 = pnand %p253, %p254
      %p256 = pneg %p255
      // Predicated region
      $region45: #{tpu_custom_call.1} parent=5 // pred_check
        _
      $region46: #{tpu_custom_call.1} parent=5 // pred_check_branch
        %258 = sbr.rel (%p255) target = $region48
      $region47: #{tpu_custom_call.1} parent=5 // pred_region
        %s259 = ssub.s32 %s19, 1
        %s260 = sand.u32 %s32, 1
        %s261 = scalar_lea.sflag [#allocation3], %s260
        %s262 = sand.u32 %s32, 1
        %s263 = smul.addr %s262, 64
        %s264 = scalar_lea.vmem [#allocation2], %s263
        // Predicated region
        $region49: #{tpu_custom_call.1} parent=47 // pred_check
          %p265 = pneg %p45
        $region50: #{tpu_custom_call.1} parent=47 // pred_check_branch
          %267 = sbr.rel (%p265) target = $region52
        $region51: #{tpu_custom_call.1} parent=47 // pred_region
          %268 = dma.done %s261, 1024
        $region52: #{tpu_custom_call.1} parent=47 // pred_fallthru
          _
        %s269 = sand.u32 %s32, 1
        %s270 = scalar_lea.sflag [#allocation3], %s269
        %s271 = sand.u32 %s32, 1
        %s272 = smul.addr %s271, 64
        %s273 = scalar_lea.vmem [#allocation2], %s272
        %p274 = pneg %p45
        %p275 = pneg %p42
        %p276 = pneg %p66
        %p277 = pneg %p63
        %p278 = pneg %p87
        %p279 = pneg %p84
        %p280 = pneg %p108
        %p281 = pneg %p105
        %p282 = pneg %p129
        %p283 = pneg %p126
        %p284 = pneg %p150
        %p285 = pneg %p147
        %p286 = pneg %p171
        %p287 = pneg %p168
        %p288 = pneg %p197
        %p289 = pneg %p194
        %s290 = sand.u32 %s184, 1
        %s291 = scalar_lea.sflag [#allocation4], %s290
        %s292 = sand.u32 %s184, 1
        %s293 = smul.addr %s292, 16
        %s294 = scalar_lea.vmem [#allocation5], %s293
        %s295 = smul.u32 8, %s24
        %s296 = smul.u32 8, %s24
        %v297 = vld [vmem:[%s1] sm:$0xff]
        %v298 = vld [vmem:[%s1 + $0x8] sm:$0xff]
        %v299 = vld [vmem:[%s1 + $0x10] sm:$0xff]
        %v300 = vld [vmem:[%s1 + $0x18] sm:$0xff]
        %v301 = vld [vmem:[%s264] sm:$0x3f]
        %v302 = vld [vmem:[%s264 + $0x8] sm:$0x3f]
        %v303 = vld [vmem:[%s264 + $0x10] sm:$0x3f]
        %v304 = vld [vmem:[%s264 + $0x18] sm:$0x3f]
        %v305 = vld [vmem:[%s264 + $0x20] sm:$0x3f]
        %v306 = vld [vmem:[%s264 + $0x28] sm:$0x3f]
        %v307 = vld [vmem:[%s264 + $0x30] sm:$0x3f]
        %v308 = vld [vmem:[%s264 + $0x38] sm:$0x3f]
        %v309 = vld [vmem:[%s2] sm:$0xff]
        %v310 = vld [vmem:[%s2 + $0x8] sm:$0xff]
        %v311 = vld [vmem:[%s2 + $0x10] sm:$0xff]
        %v312 = vld [vmem:[%s2 + $0x18] sm:$0xff]
        %314 = vset.pattern.permute.xlu0 0
        %315 = vperm.xlu0 %314, %v309
        %v316 = vpop.permute.xlu0 %315
        %319 = vset.pattern.permute.xlu0 0
        %320 = vperm.xlu0 %319, %v310
        %v321 = vpop.permute.xlu0 %320
        %324 = vset.pattern.permute.xlu0 0
        %325 = vperm.xlu0 %324, %v311
        %v326 = vpop.permute.xlu0 %325
        %329 = vset.pattern.permute.xlu0 0
        %330 = vperm.xlu0 %329, %v312
        %v331 = vpop.permute.xlu0 %330
        %vm333 = vcmask 48128
        %v335 = vsel %vm333, %v297, 0
        %v338 = vsel %vm333, %v298, 0
        %v341 = vsel %vm333, %v299, 0
        %v344 = vsel %vm333, %v300, 0
        %vm346 = vcmask 1045504
        %v348 = vsel %vm346, %v301, 0
        %v351 = vsel %vm346, %v302, 0
        %v354 = vsel %vm346, %v303, 0
        %v357 = vsel %vm346, %v304, 0
        %v360 = vsel %vm346, %v305, 0
        %v363 = vsel %vm346, %v306, 0
        %v366 = vsel %vm346, %v307, 0
        %v369 = vsel %vm346, %v308, 0
        %371 = vmatprep.subr.mxu0 0.0
        %372 = vmatpush1.msra.mxu0 0.0
        %373 = vmatprep.subr.mxu0 0.0
        %374 = vmatpush1.msra.mxu0 0.0
        %375 = vmatprep.subr.mxu0 0.0
        %376 = vmatpush1.msra.mxu0 0.0
        %377 = vmatprep.subr.mxu0 0.0
        %378 = vmatpush1.msra.mxu0 0.0
        %379 = vmatprep.subr.mxu0 0.0
        %380 = vmatpush1.msra.mxu0 0.0
        %381 = vmatprep.subr.mxu0 0.0
        %382 = vmatpush1.msra.mxu0 0.0
        %383 = vmatprep.subr.mxu0 0.0
        %384 = vmatpush1.msra.mxu0 0.0
        %385 = vmatprep.subr.mxu0 0.0
        %386 = vmatpush1.msra.mxu0 0.0
        %387 = vmatprep.subr.mxu0 0.0
        %388 = vmatpush1.msra.mxu0 0.0
        %389 = vmatprep.subr.mxu0 0.0
        %390 = vmatpush1.msra.mxu0 0.0
        %391 = vmatprep.subr.mxu0 0.0
        %392 = vmatpush1.msra.mxu0 0.0
        %393 = vmatprep.subr.mxu0 0.0
        %394 = vmatpush1.msra.mxu0 0.0
        %395 = vmatprep.subr.mxu0 0.0
        %396 = vmatpush1.msra.mxu0 0.0
        %397 = vmatprep.subr.mxu0 0.0
        %398 = vmatpush1.msra.mxu0 0.0
        %399 = vmatprep.subr.mxu0 0.0
        %400 = vmatpush1.msra.mxu0 0.0
        %401 = vmatprep.subr.mxu0 %v351
        %402 = vmatpush1.msra.mxu0 %v348
        %403 = vmatprep.subr.mxu0 0.0
        %404 = vmatpush2.msra.mxu0 0.0
        %405 = vmatprep.subr.mxu0 0.0
        %406 = vmatpush2.msra.mxu0 0.0
        %407 = vmatprep.subr.mxu0 0.0
        %408 = vmatpush2.msra.mxu0 0.0
        %409 = vmatprep.subr.mxu0 0.0
        %410 = vmatpush2.msra.mxu0 0.0
        %411 = vmatprep.subr.mxu0 0.0
        %412 = vmatpush2.msra.mxu0 0.0
        %413 = vmatprep.subr.mxu0 0.0
        %414 = vmatpush2.msra.mxu0 0.0
        %415 = vmatprep.subr.mxu0 0.0
        %416 = vmatpush2.msra.mxu0 0.0
        %417 = vmatprep.subr.mxu0 0.0
        %418 = vmatpush2.msra.mxu0 0.0
        %419 = vmatprep.subr.mxu0 0.0
        %420 = vmatpush2.msra.mxu0 0.0
        %421 = vmatprep.subr.mxu0 0.0
        %422 = vmatpush2.msra.mxu0 0.0
        %423 = vmatprep.subr.mxu0 0.0
        %424 = vmatpush2.msra.mxu0 0.0
        %425 = vmatprep.subr.mxu0 0.0
        %426 = vmatpush2.msra.mxu0 0.0
        %427 = vmatprep.subr.mxu0 0.0
        %428 = vmatpush2.msra.mxu0 0.0
        %429 = vmatprep.subr.mxu0 0.0
        %430 = vmatpush2.msra.mxu0 0.0
        %431 = vmatprep.subr.mxu0 0.0
        %432 = vmatpush2.msra.mxu0 0.0
        %433 = vmatprep.subr.mxu0 0.0
        %434 = vmatpush2.msra.mxu0 0.0
        %435 = vmatprep.mubr.f32.mxu0 0.0
        %436 = vmatmul.mubr.f32.gmra.mxu0 %v335
        %v437 = vpop.f32.mrf.mxu0
        %v438 = vadd.f32 %v316, %v437
        %v439 = vpop.f32.mrf.mxu0
        %v440 = vadd.f32 %v316, %v439
        %441 = vmatprep.mubr.f32.mxu0 0.0
        %442 = vmatmul.mubr.f32.gmra.mxu0 %v338
        %v443 = vpop.f32.mrf.mxu0
        %v444 = vadd.f32 %v321, %v443
        %v445 = vpop.f32.mrf.mxu0
        %v446 = vadd.f32 %v321, %v445
        %447 = vmatprep.mubr.f32.mxu0 0.0
        %448 = vmatmul.mubr.f32.gmra.mxu0 %v341
        %v449 = vpop.f32.mrf.mxu0
        %v450 = vadd.f32 %v326, %v449
        %v451 = vpop.f32.mrf.mxu0
        %v452 = vadd.f32 %v326, %v451
        %453 = vmatprep.mubr.f32.mxu0 0.0
        %454 = vmatmul.mubr.f32.gmra.mxu0 %v344
        %v455 = vpop.f32.mrf.mxu0
        %v456 = vadd.f32 %v331, %v455
        %v457 = vpop.f32.mrf.mxu0
        %v458 = vadd.f32 %v331, %v457
        %459 = vdwg.mxu0
        %460 = vmatprep.subr.mxu0 0.0
        %461 = vmatpush1.msra.mxu0 0.0
        %462 = vmatprep.subr.mxu0 0.0
        %463 = vmatpush1.msra.mxu0 0.0
        %464 = vmatprep.subr.mxu0 0.0
        %465 = vmatpush1.msra.mxu0 0.0
        %466 = vmatprep.subr.mxu0 0.0
        %467 = vmatpush1.msra.mxu0 0.0
        %468 = vmatprep.subr.mxu0 0.0
        %469 = vmatpush1.msra.mxu0 0.0
        %470 = vmatprep.subr.mxu0 0.0
        %471 = vmatpush1.msra.mxu0 0.0
        %472 = vmatprep.subr.mxu0 0.0
        %473 = vmatpush1.msra.mxu0 0.0
        %474 = vmatprep.subr.mxu0 0.0
        %475 = vmatpush1.msra.mxu0 0.0
        %476 = vmatprep.subr.mxu0 0.0
        %477 = vmatpush1.msra.mxu0 0.0
        %478 = vmatprep.subr.mxu0 0.0
        %479 = vmatpush1.msra.mxu0 0.0
        %480 = vmatprep.subr.mxu0 0.0
        %481 = vmatpush1.msra.mxu0 0.0
        %482 = vmatprep.subr.mxu0 0.0
        %483 = vmatpush1.msra.mxu0 0.0
        %484 = vmatprep.subr.mxu0 0.0
        %485 = vmatpush1.msra.mxu0 0.0
        %486 = vmatprep.subr.mxu0 0.0
        %487 = vmatpush1.msra.mxu0 0.0
        %488 = vmatprep.subr.mxu0 0.0
        %489 = vmatpush1.msra.mxu0 0.0
        %490 = vmatprep.subr.mxu0 %v357
        %491 = vmatpush1.msra.mxu0 %v354
        %492 = vmatprep.subr.mxu0 0.0
        %493 = vmatpush2.msra.mxu0 0.0
        %494 = vmatprep.subr.mxu0 0.0
        %495 = vmatpush2.msra.mxu0 0.0
        %496 = vmatprep.subr.mxu0 0.0
        %497 = vmatpush2.msra.mxu0 0.0
        %498 = vmatprep.subr.mxu0 0.0
        %499 = vmatpush2.msra.mxu0 0.0
        %500 = vmatprep.subr.mxu0 0.0
        %501 = vmatpush2.msra.mxu0 0.0
        %502 = vmatprep.subr.mxu0 0.0
        %503 = vmatpush2.msra.mxu0 0.0
        %504 = vmatprep.subr.mxu0 0.0
        %505 = vmatpush2.msra.mxu0 0.0
        %506 = vmatprep.subr.mxu0 0.0
        %507 = vmatpush2.msra.mxu0 0.0
        %508 = vmatprep.subr.mxu0 0.0
        %509 = vmatpush2.msra.mxu0 0.0
        %510 = vmatprep.subr.mxu0 0.0
        %511 = vmatpush2.msra.mxu0 0.0
        %512 = vmatprep.subr.mxu0 0.0
        %513 = vmatpush2.msra.mxu0 0.0
        %514 = vmatprep.subr.mxu0 0.0
        %515 = vmatpush2.msra.mxu0 0.0
        %516 = vmatprep.subr.mxu0 0.0
        %517 = vmatpush2.msra.mxu0 0.0
        %518 = vmatprep.subr.mxu0 0.0
        %519 = vmatpush2.msra.mxu0 0.0
        %520 = vmatprep.subr.mxu0 0.0
        %521 = vmatpush2.msra.mxu0 0.0
        %522 = vmatprep.subr.mxu0 0.0
        %523 = vmatpush2.msra.mxu0 0.0
        %524 = vmatprep.mubr.f32.mxu0 0.0
        %525 = vmatmul.mubr.f32.gmra.mxu0 %v335
        %v526 = vpop.f32.mrf.mxu0
        %v527 = vadd.f32 %v316, %v526
        %v528 = vpop.f32.mrf.mxu0
        %v529 = vadd.f32 %v316, %v528
        %530 = vmatprep.mubr.f32.mxu0 0.0
        %531 = vmatmul.mubr.f32.gmra.mxu0 %v338
        %v532 = vpop.f32.mrf.mxu0
        %v533 = vadd.f32 %v321, %v532
        %v534 = vpop.f32.mrf.mxu0
        %v535 = vadd.f32 %v321, %v534
        %536 = vmatprep.mubr.f32.mxu0 0.0
        %537 = vmatmul.mubr.f32.gmra.mxu0 %v341
        %v538 = vpop.f32.mrf.mxu0
        %v539 = vadd.f32 %v326, %v538
        %v540 = vpop.f32.mrf.mxu0
        %v541 = vadd.f32 %v326, %v540
        %542 = vmatprep.mubr.f32.mxu0 0.0
        %543 = vmatmul.mubr.f32.gmra.mxu0 %v344
        %v544 = vpop.f32.mrf.mxu0
        %v545 = vadd.f32 %v331, %v544
        %v546 = vpop.f32.mrf.mxu0
        %v547 = vadd.f32 %v331, %v546
        %548 = vdwg.mxu0
        %549 = vmatprep.subr.mxu0 0.0
        %550 = vmatpush1.msra.mxu0 0.0
        %551 = vmatprep.subr.mxu0 0.0
        %552 = vmatpush1.msra.mxu0 0.0
        %553 = vmatprep.subr.mxu0 0.0
        %554 = vmatpush1.msra.mxu0 0.0
        %555 = vmatprep.subr.mxu0 0.0
        %556 = vmatpush1.msra.mxu0 0.0
        %557 = vmatprep.subr.mxu0 0.0
        %558 = vmatpush1.msra.mxu0 0.0
        %559 = vmatprep.subr.mxu0 0.0
        %560 = vmatpush1.msra.mxu0 0.0
        %561 = vmatprep.subr.mxu0 0.0
        %562 = vmatpush1.msra.mxu0 0.0
        %563 = vmatprep.subr.mxu0 0.0
        %564 = vmatpush1.msra.mxu0 0.0
        %565 = vmatprep.subr.mxu0 0.0
        %566 = vmatpush1.msra.mxu0 0.0
        %567 = vmatprep.subr.mxu0 0.0
        %568 = vmatpush1.msra.mxu0 0.0
        %569 = vmatprep.subr.mxu0 0.0
        %570 = vmatpush1.msra.mxu0 0.0
        %571 = vmatprep.subr.mxu0 0.0
        %572 = vmatpush1.msra.mxu0 0.0
        %573 = vmatprep.subr.mxu0 0.0
        %574 = vmatpush1.msra.mxu0 0.0
        %575 = vmatprep.subr.mxu0 0.0
        %576 = vmatpush1.msra.mxu0 0.0
        %577 = vmatprep.subr.mxu0 0.0
        %578 = vmatpush1.msra.mxu0 0.0
        %579 = vmatprep.subr.mxu0 %v363
        %580 = vmatpush1.msra.mxu0 %v360
        %581 = vmatprep.subr.mxu0 0.0
        %582 = vmatpush2.msra.mxu0 0.0
        %583 = vmatprep.subr.mxu0 0.0
        %584 = vmatpush2.msra.mxu0 0.0
        %585 = vmatprep.subr.mxu0 0.0
        %586 = vmatpush2.msra.mxu0 0.0
        %587 = vmatprep.subr.mxu0 0.0
        %588 = vmatpush2.msra.mxu0 0.0
        %589 = vmatprep.subr.mxu0 0.0
        %590 = vmatpush2.msra.mxu0 0.0
        %591 = vmatprep.subr.mxu0 0.0
        %592 = vmatpush2.msra.mxu0 0.0
        %593 = vmatprep.subr.mxu0 0.0
        %594 = vmatpush2.msra.mxu0 0.0
        %595 = vmatprep.subr.mxu0 0.0
        %596 = vmatpush2.msra.mxu0 0.0
        %597 = vmatprep.subr.mxu0 0.0
        %598 = vmatpush2.msra.mxu0 0.0
        %599 = vmatprep.subr.mxu0 0.0
        %600 = vmatpush2.msra.mxu0 0.0
        %601 = vmatprep.subr.mxu0 0.0
        %602 = vmatpush2.msra.mxu0 0.0
        %603 = vmatprep.subr.mxu0 0.0
        %604 = vmatpush2.msra.mxu0 0.0
        %605 = vmatprep.subr.mxu0 0.0
        %606 = vmatpush2.msra.mxu0 0.0
        %607 = vmatprep.subr.mxu0 0.0
        %608 = vmatpush2.msra.mxu0 0.0
        %609 = vmatprep.subr.mxu0 0.0
        %610 = vmatpush2.msra.mxu0 0.0
        %611 = vmatprep.subr.mxu0 0.0
        %612 = vmatpush2.msra.mxu0 0.0
        %613 = vmatprep.mubr.f32.mxu0 0.0
        %614 = vmatmul.mubr.f32.gmra.mxu0 %v335
        %v615 = vpop.f32.mrf.mxu0
        %v616 = vadd.f32 %v316, %v615
        %v617 = vpop.f32.mrf.mxu0
        %v618 = vadd.f32 %v316, %v617
        %619 = vmatprep.mubr.f32.mxu0 0.0
        %620 = vmatmul.mubr.f32.gmra.mxu0 %v338
        %v621 = vpop.f32.mrf.mxu0
        %v622 = vadd.f32 %v321, %v621
        %v623 = vpop.f32.mrf.mxu0
        %v624 = vadd.f32 %v321, %v623
        %625 = vmatprep.mubr.f32.mxu0 0.0
        %626 = vmatmul.mubr.f32.gmra.mxu0 %v341
        %v627 = vpop.f32.mrf.mxu0
        %v628 = vadd.f32 %v326, %v627
        %v629 = vpop.f32.mrf.mxu0
        %v630 = vadd.f32 %v326, %v629
        %631 = vmatprep.mubr.f32.mxu0 0.0
        %632 = vmatmul.mubr.f32.gmra.mxu0 %v344
        %v633 = vpop.f32.mrf.mxu0
        %v634 = vadd.f32 %v331, %v633
        %v635 = vpop.f32.mrf.mxu0
        %v636 = vadd.f32 %v331, %v635
        %637 = vdwg.mxu0
        %638 = vmatprep.subr.mxu0 0.0
        %639 = vmatpush1.msra.mxu0 0.0
        %640 = vmatprep.subr.mxu0 0.0
        %641 = vmatpush1.msra.mxu0 0.0
        %642 = vmatprep.subr.mxu0 0.0
        %643 = vmatpush1.msra.mxu0 0.0
        %644 = vmatprep.subr.mxu0 0.0
        %645 = vmatpush1.msra.mxu0 0.0
        %646 = vmatprep.subr.mxu0 0.0
        %647 = vmatpush1.msra.mxu0 0.0
        %648 = vmatprep.subr.mxu0 0.0
        %649 = vmatpush1.msra.mxu0 0.0
        %650 = vmatprep.subr.mxu0 0.0
        %651 = vmatpush1.msra.mxu0 0.0
        %652 = vmatprep.subr.mxu0 0.0
        %653 = vmatpush1.msra.mxu0 0.0
        %654 = vmatprep.subr.mxu0 0.0
        %655 = vmatpush1.msra.mxu0 0.0
        %656 = vmatprep.subr.mxu0 0.0
        %657 = vmatpush1.msra.mxu0 0.0
        %658 = vmatprep.subr.mxu0 0.0
        %659 = vmatpush1.msra.mxu0 0.0
        %660 = vmatprep.subr.mxu0 0.0
        %661 = vmatpush1.msra.mxu0 0.0
        %662 = vmatprep.subr.mxu0 0.0
        %663 = vmatpush1.msra.mxu0 0.0
        %664 = vmatprep.subr.mxu0 0.0
        %665 = vmatpush1.msra.mxu0 0.0
        %666 = vmatprep.subr.mxu0 0.0
        %667 = vmatpush1.msra.mxu0 0.0
        %668 = vmatprep.subr.mxu0 %v369
        %669 = vmatpush1.msra.mxu0 %v366
        %670 = vmatprep.subr.mxu0 0.0
        %671 = vmatpush2.msra.mxu0 0.0
        %672 = vmatprep.subr.mxu0 0.0
        %673 = vmatpush2.msra.mxu0 0.0
        %674 = vmatprep.subr.mxu0 0.0
        %675 = vmatpush2.msra.mxu0 0.0
        %676 = vmatprep.subr.mxu0 0.0
        %677 = vmatpush2.msra.mxu0 0.0
        %678 = vmatprep.subr.mxu0 0.0
        %679 = vmatpush2.msra.mxu0 0.0
        %680 = vmatprep.subr.mxu0 0.0
        %681 = vmatpush2.msra.mxu0 0.0
        %682 = vmatprep.subr.mxu0 0.0
        %683 = vmatpush2.msra.mxu0 0.0
        %684 = vmatprep.subr.mxu0 0.0
        %685 = vmatpush2.msra.mxu0 0.0
        %686 = vmatprep.subr.mxu0 0.0
        %687 = vmatpush2.msra.mxu0 0.0
        %688 = vmatprep.subr.mxu0 0.0
        %689 = vmatpush2.msra.mxu0 0.0
        %690 = vmatprep.subr.mxu0 0.0
        %691 = vmatpush2.msra.mxu0 0.0
        %692 = vmatprep.subr.mxu0 0.0
        %693 = vmatpush2.msra.mxu0 0.0
        %694 = vmatprep.subr.mxu0 0.0
        %695 = vmatpush2.msra.mxu0 0.0
        %696 = vmatprep.subr.mxu0 0.0
        %697 = vmatpush2.msra.mxu0 0.0
        %698 = vmatprep.subr.mxu0 0.0
        %699 = vmatpush2.msra.mxu0 0.0
        %700 = vmatprep.subr.mxu0 0.0
        %701 = vmatpush2.msra.mxu0 0.0
        %702 = vmatprep.mubr.f32.mxu0 0.0
        %703 = vmatmul.mubr.f32.gmra.mxu0 %v335
        %v704 = vpop.f32.mrf.mxu0
        %v705 = vadd.f32 %v316, %v704
        %v706 = vpop.f32.mrf.mxu0
        %v707 = vadd.f32 %v316, %v706
        %708 = vmatprep.mubr.f32.mxu0 0.0
        %709 = vmatmul.mubr.f32.gmra.mxu0 %v338
        %v710 = vpop.f32.mrf.mxu0
        %v711 = vadd.f32 %v321, %v710
        %v712 = vpop.f32.mrf.mxu0
        %v713 = vadd.f32 %v321, %v712
        %714 = vmatprep.mubr.f32.mxu0 0.0
        %715 = vmatmul.mubr.f32.gmra.mxu0 %v341
        %v716 = vpop.f32.mrf.mxu0
        %v717 = vadd.f32 %v326, %v716
        %v718 = vpop.f32.mrf.mxu0
        %v719 = vadd.f32 %v326, %v718
        %720 = vmatprep.mubr.f32.mxu0 0.0
        %721 = vmatmul.mubr.f32.gmra.mxu0 %v344
        %v722 = vpop.f32.mrf.mxu0
        %v723 = vadd.f32 %v331, %v722
        %v724 = vpop.f32.mrf.mxu0
        %v725 = vadd.f32 %v331, %v724
        %726 = vdwg.mxu0
        %v727 = vtanh.pop %v438
        %v728 = vtanh.pop %v440
        %v729 = vtanh.pop %v527
        %v730 = vtanh.pop %v529
        %v731 = vtanh.pop %v616
        %v732 = vtanh.pop %v618
        %v733 = vtanh.pop %v705
        %v734 = vtanh.pop %v707
        %v735 = vtanh.pop %v444
        %v736 = vtanh.pop %v446
        %v737 = vtanh.pop %v533
        %v738 = vtanh.pop %v535
        %v739 = vtanh.pop %v622
        %v740 = vtanh.pop %v624
        %v741 = vtanh.pop %v711
        %v742 = vtanh.pop %v713
        %v743 = vtanh.pop %v450
        %v744 = vtanh.pop %v452
        %v745 = vtanh.pop %v539
        %v746 = vtanh.pop %v541
        %v747 = vtanh.pop %v628
        %v748 = vtanh.pop %v630
        %v749 = vtanh.pop %v717
        %v750 = vtanh.pop %v719
        %v751 = vtanh.pop %v456
        %v752 = vtanh.pop %v458
        %v753 = vtanh.pop %v545
        %v754 = vtanh.pop %v547
        %v755 = vtanh.pop %v634
        %v756 = vtanh.pop %v636
        %v757 = vtanh.pop %v723
        %v758 = vtanh.pop %v725
        %v759 = vld [vmem:[%s3] sm:$0xff]
        %v760 = vld [vmem:[%s3 + $0x8] sm:$0xff]
        %v761 = vld [vmem:[%s3 + $0x10] sm:$0xff]
        %v762 = vld [vmem:[%s3 + $0x18] sm:$0xff]
        %v763 = vld [vmem:[%s4] sm:$0xff]
        %v764 = vld [vmem:[%s4 + $0x8] sm:$0xff]
        %v765 = vld [vmem:[%s4 + $0x10] sm:$0xff]
        %v766 = vld [vmem:[%s4 + $0x18] sm:$0xff]
        %768 = vset.pattern.permute.xlu0 0
        %769 = vperm.xlu0 %768, %v763
        %v770 = vpop.permute.xlu0 %769
        %773 = vset.pattern.permute.xlu0 0
        %774 = vperm.xlu0 %773, %v764
        %v775 = vpop.permute.xlu0 %774
        %778 = vset.pattern.permute.xlu0 0
        %779 = vperm.xlu0 %778, %v765
        %v780 = vpop.permute.xlu0 %779
        %783 = vset.pattern.permute.xlu0 0
        %784 = vperm.xlu0 %783, %v766
        %v785 = vpop.permute.xlu0 %784
        %vm787 = vcmask 261120
        %v789 = vsel %vm787, %v759, 0
        %v792 = vsel %vm787, %v760, 0
        %v795 = vsel %vm787, %v761, 0
        %v798 = vsel %vm787, %v762, 0
        %800 = vmatprep.subr.mxu0 0.0
        %801 = vmatpush1.msra.mxu0 0.0
        %802 = vmatprep.subr.mxu0 0.0
        %803 = vmatpush1.msra.mxu0 0.0
        %804 = vmatprep.subr.mxu0 0.0
        %805 = vmatpush1.msra.mxu0 0.0
        %806 = vmatprep.subr.mxu0 0.0
        %807 = vmatpush1.msra.mxu0 0.0
        %808 = vmatprep.subr.mxu0 0.0
        %809 = vmatpush1.msra.mxu0 0.0
        %810 = vmatprep.subr.mxu0 0.0
        %811 = vmatpush1.msra.mxu0 0.0
        %812 = vmatprep.subr.mxu0 0.0
        %813 = vmatpush1.msra.mxu0 0.0
        %814 = vmatprep.subr.mxu0 0.0
        %815 = vmatpush1.msra.mxu0 0.0
        %816 = vmatprep.subr.mxu0 0.0
        %817 = vmatpush1.msra.mxu0 0.0
        %818 = vmatprep.subr.mxu0 0.0
        %819 = vmatpush1.msra.mxu0 0.0
        %820 = vmatprep.subr.mxu0 0.0
        %821 = vmatpush1.msra.mxu0 0.0
        %822 = vmatprep.subr.mxu0 0.0
        %823 = vmatpush1.msra.mxu0 0.0
        %824 = vmatprep.subr.mxu0 %v752
        %825 = vmatpush1.msra.mxu0 %v751
        %826 = vmatprep.subr.mxu0 %v744
        %827 = vmatpush1.msra.mxu0 %v743
        %828 = vmatprep.subr.mxu0 %v736
        %829 = vmatpush1.msra.mxu0 %v735
        %830 = vmatprep.subr.mxu0 %v728
        %831 = vmatpush1.msra.mxu0 %v727
        %832 = vmatprep.subr.mxu0 0.0
        %833 = vmatpush2.msra.mxu0 0.0
        %834 = vmatprep.subr.mxu0 0.0
        %835 = vmatpush2.msra.mxu0 0.0
        %836 = vmatprep.subr.mxu0 0.0
        %837 = vmatpush2.msra.mxu0 0.0
        %838 = vmatprep.subr.mxu0 0.0
        %839 = vmatpush2.msra.mxu0 0.0
        %840 = vmatprep.subr.mxu0 0.0
        %841 = vmatpush2.msra.mxu0 0.0
        %842 = vmatprep.subr.mxu0 0.0
        %843 = vmatpush2.msra.mxu0 0.0
        %844 = vmatprep.subr.mxu0 0.0
        %845 = vmatpush2.msra.mxu0 0.0
        %846 = vmatprep.subr.mxu0 0.0
        %847 = vmatpush2.msra.mxu0 0.0
        %848 = vmatprep.subr.mxu0 0.0
        %849 = vmatpush2.msra.mxu0 0.0
        %850 = vmatprep.subr.mxu0 0.0
        %851 = vmatpush2.msra.mxu0 0.0
        %852 = vmatprep.subr.mxu0 0.0
        %853 = vmatpush2.msra.mxu0 0.0
        %854 = vmatprep.subr.mxu0 0.0
        %855 = vmatpush2.msra.mxu0 0.0
        %856 = vmatprep.subr.mxu0 0.0
        %857 = vmatpush2.msra.mxu0 0.0
        %858 = vmatprep.subr.mxu0 0.0
        %859 = vmatpush2.msra.mxu0 0.0
        %860 = vmatprep.subr.mxu0 0.0
        %861 = vmatpush2.msra.mxu0 0.0
        %862 = vmatprep.subr.mxu0 0.0
        %863 = vmatpush2.msra.mxu0 0.0
        %864 = vmatprep.mubr.f32.mxu0 0.0
        %865 = vmatmul.mubr.f32.gmra.mxu0 %v789
        %v866 = vpop.f32.mrf.mxu0
        %v867 = vadd.f32 %v770, %v866
        %v868 = vpop.f32.mrf.mxu0
        %v869 = vadd.f32 %v770, %v868
        %870 = vmatprep.mubr.f32.mxu0 0.0
        %871 = vmatmul.mubr.f32.gmra.mxu0 %v792
        %v872 = vpop.f32.mrf.mxu0
        %v873 = vadd.f32 %v775, %v872
        %v874 = vpop.f32.mrf.mxu0
        %v875 = vadd.f32 %v775, %v874
        %876 = vmatprep.mubr.f32.mxu0 0.0
        %877 = vmatmul.mubr.f32.gmra.mxu0 %v795
        %v878 = vpop.f32.mrf.mxu0
        %v879 = vadd.f32 %v780, %v878
        %v880 = vpop.f32.mrf.mxu0
        %v881 = vadd.f32 %v780, %v880
        %882 = vmatprep.mubr.f32.mxu0 0.0
        %883 = vmatmul.mubr.f32.gmra.mxu0 %v798
        %v884 = vpop.f32.mrf.mxu0
        %v885 = vadd.f32 %v785, %v884
        %v886 = vpop.f32.mrf.mxu0
        %v887 = vadd.f32 %v785, %v886
        %888 = vdwg.mxu0
        %889 = vmatprep.subr.mxu0 0.0
        %890 = vmatpush1.msra.mxu0 0.0
        %891 = vmatprep.subr.mxu0 0.0
        %892 = vmatpush1.msra.mxu0 0.0
        %893 = vmatprep.subr.mxu0 0.0
        %894 = vmatpush1.msra.mxu0 0.0
        %895 = vmatprep.subr.mxu0 0.0
        %896 = vmatpush1.msra.mxu0 0.0
        %897 = vmatprep.subr.mxu0 0.0
        %898 = vmatpush1.msra.mxu0 0.0
        %899 = vmatprep.subr.mxu0 0.0
        %900 = vmatpush1.msra.mxu0 0.0
        %901 = vmatprep.subr.mxu0 0.0
        %902 = vmatpush1.msra.mxu0 0.0
        %903 = vmatprep.subr.mxu0 0.0
        %904 = vmatpush1.msra.mxu0 0.0
        %905 = vmatprep.subr.mxu0 0.0
        %906 = vmatpush1.msra.mxu0 0.0
        %907 = vmatprep.subr.mxu0 0.0
        %908 = vmatpush1.msra.mxu0 0.0
        %909 = vmatprep.subr.mxu0 0.0
        %910 = vmatpush1.msra.mxu0 0.0
        %911 = vmatprep.subr.mxu0 0.0
        %912 = vmatpush1.msra.mxu0 0.0
        %913 = vmatprep.subr.mxu0 %v754
        %914 = vmatpush1.msra.mxu0 %v753
        %915 = vmatprep.subr.mxu0 %v746
        %916 = vmatpush1.msra.mxu0 %v745
        %917 = vmatprep.subr.mxu0 %v738
        %918 = vmatpush1.msra.mxu0 %v737
        %919 = vmatprep.subr.mxu0 %v730
        %920 = vmatpush1.msra.mxu0 %v729
        %921 = vmatprep.subr.mxu0 0.0
        %922 = vmatpush2.msra.mxu0 0.0
        %923 = vmatprep.subr.mxu0 0.0
        %924 = vmatpush2.msra.mxu0 0.0
        %925 = vmatprep.subr.mxu0 0.0
        %926 = vmatpush2.msra.mxu0 0.0
        %927 = vmatprep.subr.mxu0 0.0
        %928 = vmatpush2.msra.mxu0 0.0
        %929 = vmatprep.subr.mxu0 0.0
        %930 = vmatpush2.msra.mxu0 0.0
        %931 = vmatprep.subr.mxu0 0.0
        %932 = vmatpush2.msra.mxu0 0.0
        %933 = vmatprep.subr.mxu0 0.0
        %934 = vmatpush2.msra.mxu0 0.0
        %935 = vmatprep.subr.mxu0 0.0
        %936 = vmatpush2.msra.mxu0 0.0
        %937 = vmatprep.subr.mxu0 0.0
        %938 = vmatpush2.msra.mxu0 0.0
        %939 = vmatprep.subr.mxu0 0.0
        %940 = vmatpush2.msra.mxu0 0.0
        %941 = vmatprep.subr.mxu0 0.0
        %942 = vmatpush2.msra.mxu0 0.0
        %943 = vmatprep.subr.mxu0 0.0
        %944 = vmatpush2.msra.mxu0 0.0
        %945 = vmatprep.subr.mxu0 0.0
        %946 = vmatpush2.msra.mxu0 0.0
        %947 = vmatprep.subr.mxu0 0.0
        %948 = vmatpush2.msra.mxu0 0.0
        %949 = vmatprep.subr.mxu0 0.0
        %950 = vmatpush2.msra.mxu0 0.0
        %951 = vmatprep.subr.mxu0 0.0
        %952 = vmatpush2.msra.mxu0 0.0
        %953 = vmatprep.mubr.f32.mxu0 0.0
        %954 = vmatmul.mubr.f32.gmra.mxu0 %v789
        %v955 = vpop.f32.mrf.mxu0
        %v956 = vadd.f32 %v770, %v955
        %v957 = vpop.f32.mrf.mxu0
        %v958 = vadd.f32 %v770, %v957
        %959 = vmatprep.mubr.f32.mxu0 0.0
        %960 = vmatmul.mubr.f32.gmra.mxu0 %v792
        %v961 = vpop.f32.mrf.mxu0
        %v962 = vadd.f32 %v775, %v961
        %v963 = vpop.f32.mrf.mxu0
        %v964 = vadd.f32 %v775, %v963
        %965 = vmatprep.mubr.f32.mxu0 0.0
        %966 = vmatmul.mubr.f32.gmra.mxu0 %v795
        %v967 = vpop.f32.mrf.mxu0
        %v968 = vadd.f32 %v780, %v967
        %v969 = vpop.f32.mrf.mxu0
        %v970 = vadd.f32 %v780, %v969
        %971 = vmatprep.mubr.f32.mxu0 0.0
        %972 = vmatmul.mubr.f32.gmra.mxu0 %v798
        %v973 = vpop.f32.mrf.mxu0
        %v974 = vadd.f32 %v785, %v973
        %v975 = vpop.f32.mrf.mxu0
        %v976 = vadd.f32 %v785, %v975
        %977 = vdwg.mxu0
        %978 = vmatprep.subr.mxu0 0.0
        %979 = vmatpush1.msra.mxu0 0.0
        %980 = vmatprep.subr.mxu0 0.0
        %981 = vmatpush1.msra.mxu0 0.0
        %982 = vmatprep.subr.mxu0 0.0
        %983 = vmatpush1.msra.mxu0 0.0
        %984 = vmatprep.subr.mxu0 0.0
        %985 = vmatpush1.msra.mxu0 0.0
        %986 = vmatprep.subr.mxu0 0.0
        %987 = vmatpush1.msra.mxu0 0.0
        %988 = vmatprep.subr.mxu0 0.0
        %989 = vmatpush1.msra.mxu0 0.0
        %990 = vmatprep.subr.mxu0 0.0
        %991 = vmatpush1.msra.mxu0 0.0
        %992 = vmatprep.subr.mxu0 0.0
        %993 = vmatpush1.msra.mxu0 0.0
        %994 = vmatprep.subr.mxu0 0.0
        %995 = vmatpush1.msra.mxu0 0.0
        %996 = vmatprep.subr.mxu0 0.0
        %997 = vmatpush1.msra.mxu0 0.0
        %998 = vmatprep.subr.mxu0 0.0
        %999 = vmatpush1.msra.mxu0 0.0
        %1000 = vmatprep.subr.mxu0 0.0
        %1001 = vmatpush1.msra.mxu0 0.0
        %1002 = vmatprep.subr.mxu0 %v756
        %1003 = vmatpush1.msra.mxu0 %v755
        %1004 = vmatprep.subr.mxu0 %v748
        %1005 = vmatpush1.msra.mxu0 %v747
        %1006 = vmatprep.subr.mxu0 %v740
        %1007 = vmatpush1.msra.mxu0 %v739
        %1008 = vmatprep.subr.mxu0 %v732
        %1009 = vmatpush1.msra.mxu0 %v731
        %1010 = vmatprep.subr.mxu0 0.0
        %1011 = vmatpush2.msra.mxu0 0.0
        %1012 = vmatprep.subr.mxu0 0.0
        %1013 = vmatpush2.msra.mxu0 0.0
        %1014 = vmatprep.subr.mxu0 0.0
        %1015 = vmatpush2.msra.mxu0 0.0
        %1016 = vmatprep.subr.mxu0 0.0
        %1017 = vmatpush2.msra.mxu0 0.0
        %1018 = vmatprep.subr.mxu0 0.0
        %1019 = vmatpush2.msra.mxu0 0.0
        %1020 = vmatprep.subr.mxu0 0.0
        %1021 = vmatpush2.msra.mxu0 0.0
        %1022 = vmatprep.subr.mxu0 0.0
        %1023 = vmatpush2.msra.mxu0 0.0
        %1024 = vmatprep.subr.mxu0 0.0
        %1025 = vmatpush2.msra.mxu0 0.0
        %1026 = vmatprep.subr.mxu0 0.0
        %1027 = vmatpush2.msra.mxu0 0.0
        %1028 = vmatprep.subr.mxu0 0.0
        %1029 = vmatpush2.msra.mxu0 0.0
        %1030 = vmatprep.subr.mxu0 0.0
        %1031 = vmatpush2.msra.mxu0 0.0
        %1032 = vmatprep.subr.mxu0 0.0
        %1033 = vmatpush2.msra.mxu0 0.0
        %1034 = vmatprep.subr.mxu0 0.0
        %1035 = vmatpush2.msra.mxu0 0.0
        %1036 = vmatprep.subr.mxu0 0.0
        %1037 = vmatpush2.msra.mxu0 0.0
        %1038 = vmatprep.subr.mxu0 0.0
        %1039 = vmatpush2.msra.mxu0 0.0
        %1040 = vmatprep.subr.mxu0 0.0
        %1041 = vmatpush2.msra.mxu0 0.0
        %1042 = vmatprep.mubr.f32.mxu0 0.0
        %1043 = vmatmul.mubr.f32.gmra.mxu0 %v789
        %v1044 = vpop.f32.mrf.mxu0
        %v1045 = vadd.f32 %v770, %v1044
        %v1046 = vpop.f32.mrf.mxu0
        %v1047 = vadd.f32 %v770, %v1046
        %1048 = vmatprep.mubr.f32.mxu0 0.0
        %1049 = vmatmul.mubr.f32.gmra.mxu0 %v792
        %v1050 = vpop.f32.mrf.mxu0
        %v1051 = vadd.f32 %v775, %v1050
        %v1052 = vpop.f32.mrf.mxu0
        %v1053 = vadd.f32 %v775, %v1052
        %1054 = vmatprep.mubr.f32.mxu0 0.0
        %1055 = vmatmul.mubr.f32.gmra.mxu0 %v795
        %v1056 = vpop.f32.mrf.mxu0
        %v1057 = vadd.f32 %v780, %v1056
        %v1058 = vpop.f32.mrf.mxu0
        %v1059 = vadd.f32 %v780, %v1058
        %1060 = vmatprep.mubr.f32.mxu0 0.0
        %1061 = vmatmul.mubr.f32.gmra.mxu0 %v798
        %v1062 = vpop.f32.mrf.mxu0
        %v1063 = vadd.f32 %v785, %v1062
        %v1064 = vpop.f32.mrf.mxu0
        %v1065 = vadd.f32 %v785, %v1064
        %1066 = vdwg.mxu0
        %1067 = vmatprep.subr.mxu0 0.0
        %1068 = vmatpush1.msra.mxu0 0.0
        %1069 = vmatprep.subr.mxu0 0.0
        %1070 = vmatpush1.msra.mxu0 0.0
        %1071 = vmatprep.subr.mxu0 0.0
        %1072 = vmatpush1.msra.mxu0 0.0
        %1073 = vmatprep.subr.mxu0 0.0
        %1074 = vmatpush1.msra.mxu0 0.0
        %1075 = vmatprep.subr.mxu0 0.0
        %1076 = vmatpush1.msra.mxu0 0.0
        %1077 = vmatprep.subr.mxu0 0.0
        %1078 = vmatpush1.msra.mxu0 0.0
        %1079 = vmatprep.subr.mxu0 0.0
        %1080 = vmatpush1.msra.mxu0 0.0
        %1081 = vmatprep.subr.mxu0 0.0
        %1082 = vmatpush1.msra.mxu0 0.0
        %1083 = vmatprep.subr.mxu0 0.0
        %1084 = vmatpush1.msra.mxu0 0.0
        %1085 = vmatprep.subr.mxu0 0.0
        %1086 = vmatpush1.msra.mxu0 0.0
        %1087 = vmatprep.subr.mxu0 0.0
        %1088 = vmatpush1.msra.mxu0 0.0
        %1089 = vmatprep.subr.mxu0 0.0
        %1090 = vmatpush1.msra.mxu0 0.0
        %1091 = vmatprep.subr.mxu0 %v758
        %1092 = vmatpush1.msra.mxu0 %v757
        %1093 = vmatprep.subr.mxu0 %v750
        %1094 = vmatpush1.msra.mxu0 %v749
        %1095 = vmatprep.subr.mxu0 %v742
        %1096 = vmatpush1.msra.mxu0 %v741
        %1097 = vmatprep.subr.mxu0 %v734
        %1098 = vmatpush1.msra.mxu0 %v733
        %1099 = vmatprep.subr.mxu0 0.0
        %1100 = vmatpush2.msra.mxu0 0.0
        %1101 = vmatprep.subr.mxu0 0.0
        %1102 = vmatpush2.msra.mxu0 0.0
        %1103 = vmatprep.subr.mxu0 0.0
        %1104 = vmatpush2.msra.mxu0 0.0
        %1105 = vmatprep.subr.mxu0 0.0
        %1106 = vmatpush2.msra.mxu0 0.0
        %1107 = vmatprep.subr.mxu0 0.0
        %1108 = vmatpush2.msra.mxu0 0.0
        %1109 = vmatprep.subr.mxu0 0.0
        %1110 = vmatpush2.msra.mxu0 0.0
        %1111 = vmatprep.subr.mxu0 0.0
        %1112 = vmatpush2.msra.mxu0 0.0
        %1113 = vmatprep.subr.mxu0 0.0
        %1114 = vmatpush2.msra.mxu0 0.0
        %1115 = vmatprep.subr.mxu0 0.0
        %1116 = vmatpush2.msra.mxu0 0.0
        %1117 = vmatprep.subr.mxu0 0.0
        %1118 = vmatpush2.msra.mxu0 0.0
        %1119 = vmatprep.subr.mxu0 0.0
        %1120 = vmatpush2.msra.mxu0 0.0
        %1121 = vmatprep.subr.mxu0 0.0
        %1122 = vmatpush2.msra.mxu0 0.0
        %1123 = vmatprep.subr.mxu0 0.0
        %1124 = vmatpush2.msra.mxu0 0.0
        %1125 = vmatprep.subr.mxu0 0.0
        %1126 = vmatpush2.msra.mxu0 0.0
        %1127 = vmatprep.subr.mxu0 0.0
        %1128 = vmatpush2.msra.mxu0 0.0
        %1129 = vmatprep.subr.mxu0 0.0
        %1130 = vmatpush2.msra.mxu0 0.0
        %1131 = vmatprep.mubr.f32.mxu0 0.0
        %1132 = vmatmul.mubr.f32.gmra.mxu0 %v789
        %v1133 = vpop.f32.mrf.mxu0
        %v1134 = vadd.f32 %v770, %v1133
        %v1135 = vpop.f32.mrf.mxu0
        %v1136 = vadd.f32 %v770, %v1135
        %1137 = vmatprep.mubr.f32.mxu0 0.0
        %1138 = vmatmul.mubr.f32.gmra.mxu0 %v792
        %v1139 = vpop.f32.mrf.mxu0
        %v1140 = vadd.f32 %v775, %v1139
        %v1141 = vpop.f32.mrf.mxu0
        %v1142 = vadd.f32 %v775, %v1141
        %1143 = vmatprep.mubr.f32.mxu0 0.0
        %1144 = vmatmul.mubr.f32.gmra.mxu0 %v795
        %v1145 = vpop.f32.mrf.mxu0
        %v1146 = vadd.f32 %v780, %v1145
        %v1147 = vpop.f32.mrf.mxu0
        %v1148 = vadd.f32 %v780, %v1147
        %1149 = vmatprep.mubr.f32.mxu0 0.0
        %1150 = vmatmul.mubr.f32.gmra.mxu0 %v798
        %v1151 = vpop.f32.mrf.mxu0
        %v1152 = vadd.f32 %v785, %v1151
        %v1153 = vpop.f32.mrf.mxu0
        %v1154 = vadd.f32 %v785, %v1153
        %1155 = vdwg.mxu0
        %v1156 = vtanh.pop %v867
        %v1157 = vtanh.pop %v869
        %v1158 = vtanh.pop %v956
        %v1159 = vtanh.pop %v958
        %v1160 = vtanh.pop %v1045
        %v1161 = vtanh.pop %v1047
        %v1162 = vtanh.pop %v1134
        %v1163 = vtanh.pop %v1136
        %v1164 = vtanh.pop %v873
        %v1165 = vtanh.pop %v875
        %v1166 = vtanh.pop %v962
        %v1167 = vtanh.pop %v964
        %v1168 = vtanh.pop %v1051
        %v1169 = vtanh.pop %v1053
        %v1170 = vtanh.pop %v1140
        %v1171 = vtanh.pop %v1142
        %v1172 = vtanh.pop %v879
        %v1173 = vtanh.pop %v881
        %v1174 = vtanh.pop %v968
        %v1175 = vtanh.pop %v970
        %v1176 = vtanh.pop %v1057
        %v1177 = vtanh.pop %v1059
        %v1178 = vtanh.pop %v1146
        %v1179 = vtanh.pop %v1148
        %v1180 = vtanh.pop %v885
        %v1181 = vtanh.pop %v887
        %v1182 = vtanh.pop %v974
        %v1183 = vtanh.pop %v976
        %v1184 = vtanh.pop %v1063
        %v1185 = vtanh.pop %v1065
        %v1186 = vtanh.pop %v1152
        %v1187 = vtanh.pop %v1154
        %v1188 = vld [vmem:[%s5] sm:$0x3]
        %v1189 = vld [vmem:[%s6] sm:$0x3]
        %1191 = vset.pattern.permute.xlu0 0
        %1192 = vperm.xlu0 %1191, %v1189
        %v1193 = vpop.permute.xlu0 %1192
        %v1196 = vsel %vm787, %v1188, 0
        %1198 = vmatprep.subr.mxu0 0.0
        %1199 = vmatpush1.msra.mxu0 0.0
        %1200 = vmatprep.subr.mxu0 0.0
        %1201 = vmatpush1.msra.mxu0 0.0
        %1202 = vmatprep.subr.mxu0 0.0
        %1203 = vmatpush1.msra.mxu0 0.0
        %1204 = vmatprep.subr.mxu0 0.0
        %1205 = vmatpush1.msra.mxu0 0.0
        %1206 = vmatprep.subr.mxu0 0.0
        %1207 = vmatpush1.msra.mxu0 0.0
        %1208 = vmatprep.subr.mxu0 0.0
        %1209 = vmatpush1.msra.mxu0 0.0
        %1210 = vmatprep.subr.mxu0 0.0
        %1211 = vmatpush1.msra.mxu0 0.0
        %1212 = vmatprep.subr.mxu0 0.0
        %1213 = vmatpush1.msra.mxu0 0.0
        %1214 = vmatprep.subr.mxu0 0.0
        %1215 = vmatpush1.msra.mxu0 0.0
        %1216 = vmatprep.subr.mxu0 0.0
        %1217 = vmatpush1.msra.mxu0 0.0
        %1218 = vmatprep.subr.mxu0 0.0
        %1219 = vmatpush1.msra.mxu0 0.0
        %1220 = vmatprep.subr.mxu0 0.0
        %1221 = vmatpush1.msra.mxu0 0.0
        %1222 = vmatprep.subr.mxu0 %v1181
        %1223 = vmatpush1.msra.mxu0 %v1180
        %1224 = vmatprep.subr.mxu0 %v1173
        %1225 = vmatpush1.msra.mxu0 %v1172
        %1226 = vmatprep.subr.mxu0 %v1165
        %1227 = vmatpush1.msra.mxu0 %v1164
        %1228 = vmatprep.subr.mxu0 %v1157
        %1229 = vmatpush1.msra.mxu0 %v1156
        %1230 = vmatprep.subr.mxu0 0.0
        %1231 = vmatpush2.msra.mxu0 0.0
        %1232 = vmatprep.subr.mxu0 0.0
        %1233 = vmatpush2.msra.mxu0 0.0
        %1234 = vmatprep.subr.mxu0 0.0
        %1235 = vmatpush2.msra.mxu0 0.0
        %1236 = vmatprep.subr.mxu0 0.0
        %1237 = vmatpush2.msra.mxu0 0.0
        %1238 = vmatprep.subr.mxu0 0.0
        %1239 = vmatpush2.msra.mxu0 0.0
        %1240 = vmatprep.subr.mxu0 0.0
        %1241 = vmatpush2.msra.mxu0 0.0
        %1242 = vmatprep.subr.mxu0 0.0
        %1243 = vmatpush2.msra.mxu0 0.0
        %1244 = vmatprep.subr.mxu0 0.0
        %1245 = vmatpush2.msra.mxu0 0.0
        %1246 = vmatprep.subr.mxu0 0.0
        %1247 = vmatpush2.msra.mxu0 0.0
        %1248 = vmatprep.subr.mxu0 0.0
        %1249 = vmatpush2.msra.mxu0 0.0
        %1250 = vmatprep.subr.mxu0 0.0
        %1251 = vmatpush2.msra.mxu0 0.0
        %1252 = vmatprep.subr.mxu0 0.0
        %1253 = vmatpush2.msra.mxu0 0.0
        %1254 = vmatprep.subr.mxu0 0.0
        %1255 = vmatpush2.msra.mxu0 0.0
        %1256 = vmatprep.subr.mxu0 0.0
        %1257 = vmatpush2.msra.mxu0 0.0
        %1258 = vmatprep.subr.mxu0 0.0
        %1259 = vmatpush2.msra.mxu0 0.0
        %1260 = vmatprep.subr.mxu0 0.0
        %1261 = vmatpush2.msra.mxu0 0.0
        %1262 = vmatprep.mubr.f32.mxu0 0.0
        %1263 = vmatmul.mubr.f32.gmra.mxu0 %v1196
        %v1264 = vpop.f32.mrf.mxu0
        %v1265 = vadd.f32 %v1193, %v1264
        %v1266 = vpop.f32.mrf.mxu0
        %v1267 = vadd.f32 %v1193, %v1266
        %1268 = vdwg.mxu0
        %1269 = vmatprep.subr.mxu0 0.0
        %1270 = vmatpush1.msra.mxu0 0.0
        %1271 = vmatprep.subr.mxu0 0.0
        %1272 = vmatpush1.msra.mxu0 0.0
        %1273 = vmatprep.subr.mxu0 0.0
        %1274 = vmatpush1.msra.mxu0 0.0
        %1275 = vmatprep.subr.mxu0 0.0
        %1276 = vmatpush1.msra.mxu0 0.0
        %1277 = vmatprep.subr.mxu0 0.0
        %1278 = vmatpush1.msra.mxu0 0.0
        %1279 = vmatprep.subr.mxu0 0.0
        %1280 = vmatpush1.msra.mxu0 0.0
        %1281 = vmatprep.subr.mxu0 0.0
        %1282 = vmatpush1.msra.mxu0 0.0
        %1283 = vmatprep.subr.mxu0 0.0
        %1284 = vmatpush1.msra.mxu0 0.0
        %1285 = vmatprep.subr.mxu0 0.0
        %1286 = vmatpush1.msra.mxu0 0.0
        %1287 = vmatprep.subr.mxu0 0.0
        %1288 = vmatpush1.msra.mxu0 0.0
        %1289 = vmatprep.subr.mxu0 0.0
        %1290 = vmatpush1.msra.mxu0 0.0
        %1291 = vmatprep.subr.mxu0 0.0
        %1292 = vmatpush1.msra.mxu0 0.0
        %1293 = vmatprep.subr.mxu0 %v1183
        %1294 = vmatpush1.msra.mxu0 %v1182
        %1295 = vmatprep.subr.mxu0 %v1175
        %1296 = vmatpush1.msra.mxu0 %v1174
        %1297 = vmatprep.subr.mxu0 %v1167
        %1298 = vmatpush1.msra.mxu0 %v1166
        %1299 = vmatprep.subr.mxu0 %v1159
        %1300 = vmatpush1.msra.mxu0 %v1158
        %1301 = vmatprep.subr.mxu0 0.0
        %1302 = vmatpush2.msra.mxu0 0.0
        %1303 = vmatprep.subr.mxu0 0.0
        %1304 = vmatpush2.msra.mxu0 0.0
        %1305 = vmatprep.subr.mxu0 0.0
        %1306 = vmatpush2.msra.mxu0 0.0
        %1307 = vmatprep.subr.mxu0 0.0
        %1308 = vmatpush2.msra.mxu0 0.0
        %1309 = vmatprep.subr.mxu0 0.0
        %1310 = vmatpush2.msra.mxu0 0.0
        %1311 = vmatprep.subr.mxu0 0.0
        %1312 = vmatpush2.msra.mxu0 0.0
        %1313 = vmatprep.subr.mxu0 0.0
        %1314 = vmatpush2.msra.mxu0 0.0
        %1315 = vmatprep.subr.mxu0 0.0
        %1316 = vmatpush2.msra.mxu0 0.0
        %1317 = vmatprep.subr.mxu0 0.0
        %1318 = vmatpush2.msra.mxu0 0.0
        %1319 = vmatprep.subr.mxu0 0.0
        %1320 = vmatpush2.msra.mxu0 0.0
        %1321 = vmatprep.subr.mxu0 0.0
        %1322 = vmatpush2.msra.mxu0 0.0
        %1323 = vmatprep.subr.mxu0 0.0
        %1324 = vmatpush2.msra.mxu0 0.0
        %1325 = vmatprep.subr.mxu0 0.0
        %1326 = vmatpush2.msra.mxu0 0.0
        %1327 = vmatprep.subr.mxu0 0.0
        %1328 = vmatpush2.msra.mxu0 0.0
        %1329 = vmatprep.subr.mxu0 0.0
        %1330 = vmatpush2.msra.mxu0 0.0
        %1331 = vmatprep.subr.mxu0 0.0
        %1332 = vmatpush2.msra.mxu0 0.0
        %1333 = vmatprep.mubr.f32.mxu0 0.0
        %1334 = vmatmul.mubr.f32.gmra.mxu0 %v1196
        %v1335 = vpop.f32.mrf.mxu0
        %v1336 = vadd.f32 %v1193, %v1335
        %v1337 = vpop.f32.mrf.mxu0
        %v1338 = vadd.f32 %v1193, %v1337
        %1339 = vdwg.mxu0
        %1340 = vmatprep.subr.mxu0 0.0
        %1341 = vmatpush1.msra.mxu0 0.0
        %1342 = vmatprep.subr.mxu0 0.0
        %1343 = vmatpush1.msra.mxu0 0.0
        %1344 = vmatprep.subr.mxu0 0.0
        %1345 = vmatpush1.msra.mxu0 0.0
        %1346 = vmatprep.subr.mxu0 0.0
        %1347 = vmatpush1.msra.mxu0 0.0
        %1348 = vmatprep.subr.mxu0 0.0
        %1349 = vmatpush1.msra.mxu0 0.0
        %1350 = vmatprep.subr.mxu0 0.0
        %1351 = vmatpush1.msra.mxu0 0.0
        %1352 = vmatprep.subr.mxu0 0.0
        %1353 = vmatpush1.msra.mxu0 0.0
        %1354 = vmatprep.subr.mxu0 0.0
        %1355 = vmatpush1.msra.mxu0 0.0
        %1356 = vmatprep.subr.mxu0 0.0
        %1357 = vmatpush1.msra.mxu0 0.0
        %1358 = vmatprep.subr.mxu0 0.0
        %1359 = vmatpush1.msra.mxu0 0.0
        %1360 = vmatprep.subr.mxu0 0.0
        %1361 = vmatpush1.msra.mxu0 0.0
        %1362 = vmatprep.subr.mxu0 0.0
        %1363 = vmatpush1.msra.mxu0 0.0
        %1364 = vmatprep.subr.mxu0 %v1185
        %1365 = vmatpush1.msra.mxu0 %v1184
        %1366 = vmatprep.subr.mxu0 %v1177
        %1367 = vmatpush1.msra.mxu0 %v1176
        %1368 = vmatprep.subr.mxu0 %v1169
        %1369 = vmatpush1.msra.mxu0 %v1168
        %1370 = vmatprep.subr.mxu0 %v1161
        %1371 = vmatpush1.msra.mxu0 %v1160
        %1372 = vmatprep.subr.mxu0 0.0
        %1373 = vmatpush2.msra.mxu0 0.0
        %1374 = vmatprep.subr.mxu0 0.0
        %1375 = vmatpush2.msra.mxu0 0.0
        %1376 = vmatprep.subr.mxu0 0.0
        %1377 = vmatpush2.msra.mxu0 0.0
        %1378 = vmatprep.subr.mxu0 0.0
        %1379 = vmatpush2.msra.mxu0 0.0
        %1380 = vmatprep.subr.mxu0 0.0
        %1381 = vmatpush2.msra.mxu0 0.0
        %1382 = vmatprep.subr.mxu0 0.0
        %1383 = vmatpush2.msra.mxu0 0.0
        %1384 = vmatprep.subr.mxu0 0.0
        %1385 = vmatpush2.msra.mxu0 0.0
        %1386 = vmatprep.subr.mxu0 0.0
        %1387 = vmatpush2.msra.mxu0 0.0
        %1388 = vmatprep.subr.mxu0 0.0
        %1389 = vmatpush2.msra.mxu0 0.0
        %1390 = vmatprep.subr.mxu0 0.0
        %1391 = vmatpush2.msra.mxu0 0.0
        %1392 = vmatprep.subr.mxu0 0.0
        %1393 = vmatpush2.msra.mxu0 0.0
        %1394 = vmatprep.subr.mxu0 0.0
        %1395 = vmatpush2.msra.mxu0 0.0
        %1396 = vmatprep.subr.mxu0 0.0
        %1397 = vmatpush2.msra.mxu0 0.0
        %1398 = vmatprep.subr.mxu0 0.0
        %1399 = vmatpush2.msra.mxu0 0.0
        %1400 = vmatprep.subr.mxu0 0.0
        %1401 = vmatpush2.msra.mxu0 0.0
        %1402 = vmatprep.subr.mxu0 0.0
        %1403 = vmatpush2.msra.mxu0 0.0
        %1404 = vmatprep.mubr.f32.mxu0 0.0
        %1405 = vmatmul.mubr.f32.gmra.mxu0 %v1196
        %v1406 = vpop.f32.mrf.mxu0
        %v1407 = vadd.f32 %v1193, %v1406
        %v1408 = vpop.f32.mrf.mxu0
        %v1409 = vadd.f32 %v1193, %v1408
        %1410 = vdwg.mxu0
        %1411 = vmatprep.subr.mxu0 0.0
        %1412 = vmatpush1.msra.mxu0 0.0
        %1413 = vmatprep.subr.mxu0 0.0
        %1414 = vmatpush1.msra.mxu0 0.0
        %1415 = vmatprep.subr.mxu0 0.0
        %1416 = vmatpush1.msra.mxu0 0.0
        %1417 = vmatprep.subr.mxu0 0.0
        %1418 = vmatpush1.msra.mxu0 0.0
        %1419 = vmatprep.subr.mxu0 0.0
        %1420 = vmatpush1.msra.mxu0 0.0
        %1421 = vmatprep.subr.mxu0 0.0
        %1422 = vmatpush1.msra.mxu0 0.0
        %1423 = vmatprep.subr.mxu0 0.0
        %1424 = vmatpush1.msra.mxu0 0.0
        %1425 = vmatprep.subr.mxu0 0.0
        %1426 = vmatpush1.msra.mxu0 0.0
        %1427 = vmatprep.subr.mxu0 0.0
        %1428 = vmatpush1.msra.mxu0 0.0
        %1429 = vmatprep.subr.mxu0 0.0
        %1430 = vmatpush1.msra.mxu0 0.0
        %1431 = vmatprep.subr.mxu0 0.0
        %1432 = vmatpush1.msra.mxu0 0.0
        %1433 = vmatprep.subr.mxu0 0.0
        %1434 = vmatpush1.msra.mxu0 0.0
        %1435 = vmatprep.subr.mxu0 %v1187
        %1436 = vmatpush1.msra.mxu0 %v1186
        %1437 = vmatprep.subr.mxu0 %v1179
        %1438 = vmatpush1.msra.mxu0 %v1178
        %1439 = vmatprep.subr.mxu0 %v1171
        %1440 = vmatpush1.msra.mxu0 %v1170
        %1441 = vmatprep.subr.mxu0 %v1163
        %1442 = vmatpush1.msra.mxu0 %v1162
        %1443 = vmatprep.subr.mxu0 0.0
        %1444 = vmatpush2.msra.mxu0 0.0
        %1445 = vmatprep.subr.mxu0 0.0
        %1446 = vmatpush2.msra.mxu0 0.0
        %1447 = vmatprep.subr.mxu0 0.0
        %1448 = vmatpush2.msra.mxu0 0.0
        %1449 = vmatprep.subr.mxu0 0.0
        %1450 = vmatpush2.msra.mxu0 0.0
        %1451 = vmatprep.subr.mxu0 0.0
        %1452 = vmatpush2.msra.mxu0 0.0
        %1453 = vmatprep.subr.mxu0 0.0
        %1454 = vmatpush2.msra.mxu0 0.0
        %1455 = vmatprep.subr.mxu0 0.0
        %1456 = vmatpush2.msra.mxu0 0.0
        %1457 = vmatprep.subr.mxu0 0.0
        %1458 = vmatpush2.msra.mxu0 0.0
        %1459 = vmatprep.subr.mxu0 0.0
        %1460 = vmatpush2.msra.mxu0 0.0
        %1461 = vmatprep.subr.mxu0 0.0
        %1462 = vmatpush2.msra.mxu0 0.0
        %1463 = vmatprep.subr.mxu0 0.0
        %1464 = vmatpush2.msra.mxu0 0.0
        %1465 = vmatprep.subr.mxu0 0.0
        %1466 = vmatpush2.msra.mxu0 0.0
        %1467 = vmatprep.subr.mxu0 0.0
        %1468 = vmatpush2.msra.mxu0 0.0
        %1469 = vmatprep.subr.mxu0 0.0
        %1470 = vmatpush2.msra.mxu0 0.0
        %1471 = vmatprep.subr.mxu0 0.0
        %1472 = vmatpush2.msra.mxu0 0.0
        %1473 = vmatprep.subr.mxu0 0.0
        %1474 = vmatpush2.msra.mxu0 0.0
        %1475 = vmatprep.mubr.f32.mxu0 0.0
        %1476 = vmatmul.mubr.f32.gmra.mxu0 %v1196
        %v1477 = vpop.f32.mrf.mxu0
        %v1478 = vadd.f32 %v1193, %v1477
        %v1479 = vpop.f32.mrf.mxu0
        %v1480 = vadd.f32 %v1193, %v1479
        %1481 = vdwg.mxu0
        %v1490 = vcombine.low %v1265, %v1267
        %v1491 = vcombine.low %v1336, %v1338
        %v1493 = vunpack.c.l.s4 1983009808
        %v1494 = vunpack.c.0.s8 %v1493
        %v1495 = vlaneseq
        %v1496 = vshrl.u32 %v1495, 7
        %v1497 = vsub.s32 %v1494, %v1496
        %v1498 = vrot.slane %v1490, %v1497
        %v1500 = vunpack.c.l.s4 1983009808
        %v1501 = vunpack.c.0.s8 %v1500
        %v1502 = vlaneseq
        %v1503 = vshrl.u32 %v1502, 7
        %v1504 = vsub.s32 %v1501, %v1503
        %v1505 = vrot.slane %v1491, %v1504
        %v1506 = vcombine.low %v1498, %v1505
        %v1507 = vcombine.low %v1407, %v1409
        %v1508 = vcombine.low %v1478, %v1480
        %v1510 = vunpack.c.l.s4 1983009808
        %v1511 = vunpack.c.0.s8 %v1510
        %v1512 = vlaneseq
        %v1513 = vshrl.u32 %v1512, 7
        %v1514 = vsub.s32 %v1511, %v1513
        %v1515 = vrot.slane %v1507, %v1514
        %v1517 = vunpack.c.l.s4 1983009808
        %v1518 = vunpack.c.0.s8 %v1517
        %v1519 = vlaneseq
        %v1520 = vshrl.u32 %v1519, 7
        %v1521 = vsub.s32 %v1518, %v1520
        %v1522 = vrot.slane %v1508, %v1521
        %v1523 = vcombine.low %v1515, %v1522
        %1526 = vst [vmem:[%s294] sm:$0xff] %v1506
        %1527 = vst [vmem:[%s294 + $0x8] sm:$0xff] %v1523
        %s1528 = sand.u32 %s184, 1
        %s1529 = scalar_lea.sflag [#allocation4], %s1528
        %s1530 = sand.u32 %s184, 1
        %s1531 = smul.addr %s1530, 16
        %s1532 = scalar_lea.vmem [#allocation5], %s1531
        // Predicated region
        $region53: #{tpu_custom_call.1} parent=47 // pred_check
          %p1533 = pneg %p194
        $region54: #{tpu_custom_call.1} parent=47 // pred_check_branch
          %1535 = sbr.rel (%p1533) target = $region56
        $region55: #{tpu_custom_call.1} parent=47 // pred_region
          %s1536 = smul.u32 8, %s24
          %s1538 = ssub.s32 256, 256
          %1539 = vsyncadd %s1529, %s1538
          %s1540 = smul.addr %s1536, 32
          %s1541 = scalar_lea.hbm %s7, %s1540
          %s1543 = sshll.u32 %s1532, 4
          %s1544 = int_to_ptr.vmem [resolvable:$true] %s1543
          %1546 = dma.vmem_to_hbm [thread:$0]  %s1544, 256, %s1541, %s1529
        $region56: #{tpu_custom_call.1} parent=47 // pred_fallthru
          _
      $region48: #{tpu_custom_call.1} parent=5 // pred_fallthru
        _
      %p1547 = scmp.le.s32.totalorder 2, %s19
      // Predicated region
      $region57: #{tpu_custom_call.1} parent=5 // pred_check
        %p1548 = pneg %p1547
      $region58: #{tpu_custom_call.1} parent=5 // pred_check_branch
        %1550 = sbr.rel (%p1548) target = $region60
      $region59: #{tpu_custom_call.1} parent=5 // pred_region
        %s1551 = ssub.s32 %s19, 2
        // Predicated region
        $region61: #{tpu_custom_call.1} parent=59 // pred_check
          %p1552 = pneg %p200
        $region62: #{tpu_custom_call.1} parent=59 // pred_check_branch
          %1554 = sbr.rel (%p1552) target = $region64
        $region63: #{tpu_custom_call.1} parent=59 // pred_region
          %s1555 = sand.u32 %s185, 1
          %s1556 = scalar_lea.sflag [#allocation4], %s1555
          %s1557 = sand.u32 %s185, 1
          %s1558 = smul.addr %s1557, 16
          %s1559 = scalar_lea.vmem [#allocation5], %s1558
          %1560 = dma.done %s1556, 256
        $region64: #{tpu_custom_call.1} parent=59 // pred_fallthru
          _
      $region60: #{tpu_custom_call.1} parent=5 // pred_fallthru
        _
    $region6: #{tpu_custom_call.1} parent=1 // loop_footer
      %s23 = sadd.s32 1, %s19
    $region7: #{tpu_custom_call.1} parent=1 // loop_footer_branch
      %18 = sbr.rel target = $region3
    $region8: #{tpu_custom_call.1} parent=1 // loop_exit
      _
    %1561 = vsyncpa [#allocation3], 1
    %s1562 = scalar_lea.sflag [#allocation3], 1
    %1563 = vsyncpa %s1562, 1
    %1564 = vsyncpa [#allocation4], 1
    %s1565 = scalar_lea.sflag [#allocation4], 1
    %1566 = vsyncpa %s1565, 1

</llo_original>
